<compile_context>
chip_gen: v7x
topology: tpu7x:2x2x1
jax: 0.10.0
libtpu: 0.0.40
codegen_flags: <defaults>
</compile_context>

<pallas_src>
import jax
import jax.numpy as jnp
from jax.experimental import pallas as pl
from jax.experimental.pallas import tpu as pltpu


def _round_up(n: int, m: int) -> int:
    return ((n + m - 1) // m) * m


def _vmem_capacity_bytes() -> int:
    try:
        return int(pltpu.get_tpu_info().vmem_capacity_bytes)
    except Exception:
        return 64 << 20  # conservative default (v7x per-TC VMEM)


# ----------------------------------------------------------------------------- kernel
def ffnetwork_kernel(x_ref, w1_ref, b1_ref, w2_ref, b2_ref, w3_ref, b3_ref, o_ref):
    # layer1 + ReLU: MXU in compute dtype, f32 accumulate, downcast right in the epilogue
    x = x_ref[...].astype(w1_ref.dtype)
    h1 = jnp.dot(x, w1_ref[...], preferred_element_type=jnp.float32)
    h1 = jnp.maximum(h1 + b1_ref[...], 0.0).astype(w2_ref.dtype)
    # layer2 + ReLU
    h2 = jnp.dot(h1, w2_ref[...], preferred_element_type=jnp.float32)
    h2 = jnp.maximum(h2 + b2_ref[...], 0.0).astype(w3_ref.dtype)
    # layer3 (no activation)
    out = jnp.dot(h2, w3_ref[...], preferred_element_type=jnp.float32)
    o_ref[...] = (out + b3_ref[...]).astype(o_ref.dtype)


# ------------------------------------------------------------------- one-time weight prep
def prepare_ffnetwork_params(w1, b1, w2, b2, w3, b3, *, use_bf16=True):
    """Pad hidden/output dims to 128 lanes and cast weights to the compute dtype ONCE.

    Zero padding is exact: padded hidden columns get zero weights and zero bias
    (ReLU(0)=0) and zero outgoing weights; padded output columns are sliced off.
    The first-layer K rows (input_dim) are deliberately left unpadded.
    """
    in_dim, h1_dim = w1.shape
    h2_dim = w2.shape[1]
    out_dim = w3.shape[1]
    H1_P, H2_P, OUT_P = (_round_up(d, 128) for d in (h1_dim, h2_dim, out_dim))
    cdt = jnp.bfloat16 if use_bf16 else jnp.float32

    def padw(w, rows, cols):
        w = w.astype(jnp.float32)
        return jnp.pad(w, ((0, rows - w.shape[0]), (0, cols - w.shape[1]))).astype(cdt)

    def padb(b, cols):  # biases stay f32 (VPU epilogue)
        b = b.astype(jnp.float32).reshape(1, -1)
        return jnp.pad(b, ((0, 0), (0, cols - b.shape[1])))

    params = (padw(w1, in_dim, H1_P), padb(b1, H1_P),
              padw(w2, H1_P, H2_P), padb(b2, H2_P),
              padw(w3, H2_P, OUT_P), padb(b3, OUT_P))
    dims = dict(in_dim=in_dim, out_dim=out_dim, H1_P=H1_P, H2_P=H2_P, OUT_P=OUT_P,
                wbytes=jnp.dtype(cdt).itemsize)
    return params, dims


# --------------------------------------------------------------------------- forward pass
def ffnetwork_forward(x, prepared, *, tile_b=None, out_dtype=jnp.float32):
    """x: (B, input_dim) -> (B, output_dim); prepared = prepare_ffnetwork_params(...)."""
    params, dims = prepared
    B, in_dim = x.shape
    assert in_dim == dims["in_dim"], "input feature dim mismatch"
    H1_P, H2_P, OUT_P = dims["H1_P"], dims["H2_P"], dims["OUT_P"]
    wbytes = dims["wbytes"]
    xbytes = jnp.dtype(x.dtype).itemsize
    obytes = jnp.dtype(out_dtype).itemsize

    # ---- generation-aware VMEM budget & batch tile -----------------------------------
    budget = max(32 << 20, (_vmem_capacity_bytes() * 13) // 16)  # ~52 MiB v7x, ~104 MiB v5e/v6e
    resident = ((in_dim * H1_P + H1_P * H2_P + H2_P * OUT_P) * wbytes
                + (H1_P + H2_P + OUT_P) * 4)                      # single-buffered weights + f32 biases
    per_row = (2 * in_dim * xbytes          # streamed x tile (double-buffered)
               + 2 * OUT_P * obytes         # streamed out tile (double-buffered)
               + 4 * (H1_P + H2_P)          # f32 dot results before downcast
               + wbytes * (H1_P + H2_P))    # downcast activations feeding the next dot
    avail = budget - resident - (4 << 20)
    tile_cap = max(8, (avail // (2 * per_row)) // 8 * 8)  # 2x headroom on streamed tiles
    # TODO(synk): if `resident` alone exceeds the budget (hidden dims >= ~4096 bf16 on
    # v7x's 64 MiB VMEM), add an N/K-tiled weight-streaming fallback (second grid axis
    # marked "arbitrary" + VMEM f32 accumulator) instead of relying on full residency.

    if tile_b is None:
        full = _round_up(B, 8)
        # whole batch in one step when it fits, else fat 512-row tiles
        tile_b = full if full <= tile_cap else min(512, tile_cap)
    tile_b = max(8, _round_up(int(tile_b), 8))
    B_P = _round_up(B, tile_b)
    grid = (B_P // tile_b,)

    x_p = x if B_P == B else jnp.pad(x, ((0, B_P - B), (0, 0)))

    vmem_limit = int(min(budget, max(32 << 20, resident + 2 * tile_b * per_row + (8 << 20))))

    def build(single_buffer_consts: bool):
        def const_spec(shape):
            if single_buffer_consts:
                # constant index_map -> double-buffering only wastes VMEM
                return pl.BlockSpec(shape, lambda i: (0, 0), pipeline_mode=pl.Buffered(1))
            return pl.BlockSpec(shape, lambda i: (0, 0))

        in_specs = [pl.BlockSpec((tile_b, in_dim), lambda i: (i, 0))]  # x streams, unpadded lanes
        in_specs += [const_spec(p.shape) for p in params]
        return pl.pallas_call(
            ffnetwork_kernel,
            out_shape=jax.ShapeDtypeStruct((B_P, OUT_P), out_dtype),
            grid=grid,
            in_specs=in_specs,
            out_specs=pl.BlockSpec((tile_b, OUT_P), lambda i: (i, 0)),
            compiler_params=pltpu.CompilerParams(
                # TODO(synk): use pltpu.CORE_PARALLEL here for dual-TensorCore sharding on v7x
                # (each TC then holds its own weight copy within its 64 MiB VMEM).
                dimension_semantics=("parallel",),
                vmem_limit_bytes=vmem_limit,
            ),
        )

    try:
        out_padded = build(True)(x_p, *params)
    except Exception:
        # pipeline_mode / Buffered(1) not supported by this jax version -> default buffering.
        out_padded = build(False)(x_p, *params)

    return out_padded[:B, :dims["out_dim"]]


def ffnetwork_apply(x, w1, b1, w2, b2, w3, b3, *, use_bf16=True, **kw):
    """Convenience one-shot API (prepares weights every call; prefer prepare + forward)."""
    return ffnetwork_forward(x, prepare_ffnetwork_params(w1, b1, w2, b2, w3, b3,
                                                         use_bf16=use_bf16), **kw)


# --------------------------------------------------------------------------------- utils
def init_params(key, input_dim, hidden_dim1, hidden_dim2, output_dim):
    """Deterministic init mimicking PyTorch nn.Linear default U[-1/sqrt(fan_in), 1/sqrt(fan_in)]."""
    ks = jax.random.split(key, 6)

    def lin(kw, kb, fan_in, fan_out):
        bound = 1.0 / jnp.sqrt(fan_in)
        w = jax.random.uniform(kw, (fan_in, fan_out), jnp.float32, -bound, bound)
        b = jax.random.uniform(kb, (1, fan_out), jnp.float32, -bound, bound)
        return w, b

    w1, b1 = lin(ks[0], ks[1], input_dim, hidden_dim1)
    w2, b2 = lin(ks[2], ks[3], hidden_dim1, hidden_dim2)
    w3, b3 = lin(ks[4], ks[5], hidden_dim2, output_dim)
    return w1, b1, w2, b2, w3, b3


def _reference(x, w1, b1, w2, b2, w3, b3, use_bf16=True):
    """Pure-JAX reference with the same bf16-in / f32-accumulate numerics."""
    cast = (lambda a: a.astype(jnp.bfloat16)) if use_bf16 else (lambda a: a)
    h = jnp.dot(cast(x), cast(w1), preferred_element_type=jnp.float32) + b1
    h = jnp.maximum(h, 0.0)
    h = jnp.dot(cast(h), cast(w2), preferred_element_type=jnp.float32) + b2
    h = jnp.maximum(h, 0.0)
    return jnp.dot(cast(h), cast(w3), preferred_element_type=jnp.float32) + b3


if __name__ == "__main__":
    # Small shapes consistent with the module's forward: a batch of observations.
    batch = 300                      # non-multiple of 8 -> exercises batch padding
    input_dim, hidden_dim1, hidden_dim2, output_dim = 16, 64, 64, 4

    key = jax.random.PRNGKey(0)
    k_x, k_p = jax.random.split(key)
    x = jax.random.normal(k_x, (batch, input_dim), jnp.float32)
    raw_params = init_params(k_p, input_dim, hidden_dim1, hidden_dim2, output_dim)

    # Weights are padded / cast exactly once (hoisted out of the per-call path).
    prepared = prepare_ffnetwork_params(*raw_params, use_bf16=True)

    out = ffnetwork_forward(x, prepared)
    out = jax.block_until_ready(out)
    assert out.shape == (batch, output_dim)
    assert out.dtype == jnp.float32

    # Reference check against the same bf16-input / f32-accumulate math.
    ref_bf16 = _reference(x, *raw_params, use_bf16=True)
    assert jnp.allclose(out, ref_bf16, atol=2e-3, rtol=2e-3), "mismatch vs bf16 reference"

    # Looser sanity check vs the pure-f32 PyTorch-equivalent math.
    ref_f32 = _reference(x, *raw_params, use_bf16=False)
    assert jnp.allclose(out, ref_f32, atol=5e-2, rtol=5e-2), "mismatch vs f32 reference"

    print("KERNEL_OK")
</pallas_src>

<mosaic_0001>
module attributes {stable_mosaic.version = 11 : i64} {
  func.func @ffnetwork_kernel(%arg0: i32, %arg1: memref<304x16xf32, #tpu.memory_space<vmem>>, %arg2: memref<16x128xbf16, #tpu.memory_space<vmem>>, %arg3: memref<1x128xf32, #tpu.memory_space<vmem>>, %arg4: memref<128x128xbf16, #tpu.memory_space<vmem>>, %arg5: memref<1x128xf32, #tpu.memory_space<vmem>>, %arg6: memref<128x128xbf16, #tpu.memory_space<vmem>>, %arg7: memref<1x128xf32, #tpu.memory_space<vmem>>, %arg8: memref<304x128xf32, #tpu.memory_space<vmem>>) attributes {dimension_semantics = [#tpu.dimension_semantics<parallel>], iteration_bounds = array<i64: 1>, scalar_prefetch = 0 : i64, scratch_operands = 0 : i64, tpu.core_type = #tpu.core_type<tc>, window_params = [{transform_indices = @transform_0, window_bounds = array<i64: 304, 16>}, {pipeline_mode = #tpu.pipeline_mode<synchronous>, transform_indices = @transform_1, window_bounds = array<i64: 16, 128>}, {pipeline_mode = #tpu.pipeline_mode<synchronous>, transform_indices = @transform_2, window_bounds = array<i64: 1, 128>}, {pipeline_mode = #tpu.pipeline_mode<synchronous>, transform_indices = @transform_3, window_bounds = array<i64: 128, 128>}, {pipeline_mode = #tpu.pipeline_mode<synchronous>, transform_indices = @transform_4, window_bounds = array<i64: 1, 128>}, {pipeline_mode = #tpu.pipeline_mode<synchronous>, transform_indices = @transform_5, window_bounds = array<i64: 128, 128>}, {pipeline_mode = #tpu.pipeline_mode<synchronous>, transform_indices = @transform_6, window_bounds = array<i64: 1, 128>}, {transform_indices = @transform_7, window_bounds = array<i64: 304, 128>}]} {
    %c0 = arith.constant 0 : index
    %c0_0 = arith.constant 0 : index
    %0 = vector.load %arg1[%c0, %c0_0] : memref<304x16xf32, #tpu.memory_space<vmem>>, vector<304x16xf32>
    %1 = arith.truncf %0 : vector<304x16xf32> to vector<304x16xbf16>
    %c0_1 = arith.constant 0 : index
    %c0_2 = arith.constant 0 : index
    %2 = vector.load %arg2[%c0_1, %c0_2] : memref<16x128xbf16, #tpu.memory_space<vmem>>, vector<16x128xbf16>
    %cst = arith.constant dense<0.000000e+00> : vector<304x128xf32>
    %3 = tpu.matmul %1, %2, %cst {dimension_numbers = #tpu.dot_dimension_numbers<[1], [0], [0], [1], [0, 0, 1, 1], [], []>} : vector<304x16xbf16>, vector<16x128xbf16>, vector<304x128xf32> -> vector<304x128xf32>
    %c0_3 = arith.constant 0 : index
    %c0_4 = arith.constant 0 : index
    %4 = vector.load %arg3[%c0_3, %c0_4] : memref<1x128xf32, #tpu.memory_space<vmem>>, vector<1x128xf32>
    %5 = vector.broadcast %4 : vector<1x128xf32> to vector<304x128xf32>
    %6 = arith.addf %3, %5 : vector<304x128xf32>
    %cst_5 = arith.constant 0.000000e+00 : f32
    %7 = vector.broadcast %cst_5 : f32 to vector<304x128xf32>
    %8 = arith.maximumf %6, %7 : vector<304x128xf32>
    %9 = arith.truncf %8 : vector<304x128xf32> to vector<304x128xbf16>
    %c0_6 = arith.constant 0 : index
    %c0_7 = arith.constant 0 : index
    %10 = vector.load %arg4[%c0_6, %c0_7] : memref<128x128xbf16, #tpu.memory_space<vmem>>, vector<128x128xbf16>
    %cst_8 = arith.constant dense<0.000000e+00> : vector<304x128xf32>
    %11 = tpu.matmul %9, %10, %cst_8 {dimension_numbers = #tpu.dot_dimension_numbers<[1], [0], [0], [1], [0, 0, 1, 1], [], []>} : vector<304x128xbf16>, vector<128x128xbf16>, vector<304x128xf32> -> vector<304x128xf32>
    %c0_9 = arith.constant 0 : index
    %c0_10 = arith.constant 0 : index
    %12 = vector.load %arg5[%c0_9, %c0_10] : memref<1x128xf32, #tpu.memory_space<vmem>>, vector<1x128xf32>
    %13 = vector.broadcast %12 : vector<1x128xf32> to vector<304x128xf32>
    %14 = arith.addf %11, %13 : vector<304x128xf32>
    %cst_11 = arith.constant 0.000000e+00 : f32
    %15 = vector.broadcast %cst_11 : f32 to vector<304x128xf32>
    %16 = arith.maximumf %14, %15 : vector<304x128xf32>
    %17 = arith.truncf %16 : vector<304x128xf32> to vector<304x128xbf16>
    %c0_12 = arith.constant 0 : index
    %c0_13 = arith.constant 0 : index
    %18 = vector.load %arg6[%c0_12, %c0_13] : memref<128x128xbf16, #tpu.memory_space<vmem>>, vector<128x128xbf16>
    %cst_14 = arith.constant dense<0.000000e+00> : vector<304x128xf32>
    %19 = tpu.matmul %17, %18, %cst_14 {dimension_numbers = #tpu.dot_dimension_numbers<[1], [0], [0], [1], [0, 0, 1, 1], [], []>} : vector<304x128xbf16>, vector<128x128xbf16>, vector<304x128xf32> -> vector<304x128xf32>
    %c0_15 = arith.constant 0 : index
    %c0_16 = arith.constant 0 : index
    %20 = vector.load %arg7[%c0_15, %c0_16] : memref<1x128xf32, #tpu.memory_space<vmem>>, vector<1x128xf32>
    %21 = vector.broadcast %20 : vector<1x128xf32> to vector<304x128xf32>
    %22 = arith.addf %19, %21 : vector<304x128xf32>
    %c0_17 = arith.constant 0 : index
    %c0_18 = arith.constant 0 : index
    %23 = vector.load %arg8[%c0_17, %c0_18] : memref<304x128xf32, #tpu.memory_space<vmem>>, vector<304x128xf32>
    tpu.vector_store %arg8[%c0_17, %c0_18], %22 {strides = array<i32>} : memref<304x128xf32, #tpu.memory_space<vmem>>, vector<304x128xf32>,
    return
  }
  func.func @transform_0(%arg0: i32) -> (i32, i32) {
    %c0_i32 = arith.constant 0 : i32
    %c0_i32_0 = arith.constant 0 : i32
    return %arg0, %c0_i32 : i32, i32
  }
  func.func @transform_1(%arg0: i32) -> (i32, i32) {
    %c0_i32 = arith.constant 0 : i32
    %c0_i32_0 = arith.constant 0 : i32
    %c0_i32_1 = arith.constant 0 : i32
    return %c0_i32, %c0_i32_0 : i32, i32
  }
  func.func @transform_2(%arg0: i32) -> (i32, i32) {
    %c0_i32 = arith.constant 0 : i32
    %c0_i32_0 = arith.constant 0 : i32
    %c0_i32_1 = arith.constant 0 : i32
    return %c0_i32, %c0_i32_0 : i32, i32
  }
  func.func @transform_3(%arg0: i32) -> (i32, i32) {
    %c0_i32 = arith.constant 0 : i32
    %c0_i32_0 = arith.constant 0 : i32
    %c0_i32_1 = arith.constant 0 : i32
    return %c0_i32, %c0_i32_0 : i32, i32
  }
  func.func @transform_4(%arg0: i32) -> (i32, i32) {
    %c0_i32 = arith.constant 0 : i32
    %c0_i32_0 = arith.constant 0 : i32
    %c0_i32_1 = arith.constant 0 : i32
    return %c0_i32, %c0_i32_0 : i32, i32
  }
  func.func @transform_5(%arg0: i32) -> (i32, i32) {
    %c0_i32 = arith.constant 0 : i32
    %c0_i32_0 = arith.constant 0 : i32
    %c0_i32_1 = arith.constant 0 : i32
    return %c0_i32, %c0_i32_0 : i32, i32
  }
  func.func @transform_6(%arg0: i32) -> (i32, i32) {
    %c0_i32 = arith.constant 0 : i32
    %c0_i32_0 = arith.constant 0 : i32
    %c0_i32_1 = arith.constant 0 : i32
    return %c0_i32, %c0_i32_0 : i32, i32
  }
  func.func @transform_7(%arg0: i32) -> (i32, i32) {
    %c0_i32 = arith.constant 0 : i32
    %c0_i32_0 = arith.constant 0 : i32
    return %arg0, %c0_i32 : i32, i32
  }
}

module attributes {stable_mosaic.version = 11 : i64} {
  func.func @ffnetwork_kernel(%arg0: i32, %arg1: memref<304x16xf32, #tpu.memory_space<vmem>>, %arg2: memref<16x128xbf16, #tpu.memory_space<vmem>>, %arg3: memref<1x128xf32, #tpu.memory_space<vmem>>, %arg4: memref<128x128xbf16, #tpu.memory_space<vmem>>, %arg5: memref<1x128xf32, #tpu.memory_space<vmem>>, %arg6: memref<128x128xbf16, #tpu.memory_space<vmem>>, %arg7: memref<1x128xf32, #tpu.memory_space<vmem>>, %arg8: memref<304x128xf32, #tpu.memory_space<vmem>>) attributes {dimension_semantics = [#tpu.dimension_semantics<parallel>], iteration_bounds = array<i64: 1>, scalar_prefetch = 0 : i64, scratch_operands = 0 : i64, tpu.core_type = #tpu.core_type<tc>, window_params = [{transform_indices = @transform_0, window_bounds = array<i64: 304, 16>}, {pipeline_mode = #tpu.pipeline_mode<synchronous>, transform_indices = @transform_1, window_bounds = array<i64: 16, 128>}, {pipeline_mode = #tpu.pipeline_mode<synchronous>, transform_indices = @transform_2, window_bounds = array<i64: 1, 128>}, {pipeline_mode = #tpu.pipeline_mode<synchronous>, transform_indices = @transform_3, window_bounds = array<i64: 128, 128>}, {pipeline_mode = #tpu.pipeline_mode<synchronous>, transform_indices = @transform_4, window_bounds = array<i64: 1, 128>}, {pipeline_mode = #tpu.pipeline_mode<synchronous>, transform_indices = @transform_5, window_bounds = array<i64: 128, 128>}, {pipeline_mode = #tpu.pipeline_mode<synchronous>, transform_indices = @transform_6, window_bounds = array<i64: 1, 128>}, {transform_indices = @transform_7, window_bounds = array<i64: 304, 128>}]} {
    %c0 = arith.constant 0 : index
    %c0_0 = arith.constant 0 : index
    %0 = vector.load %arg1[%c0, %c0_0] : memref<304x16xf32, #tpu.memory_space<vmem>>, vector<304x16xf32>
    %1 = arith.truncf %0 : vector<304x16xf32> to vector<304x16xbf16>
    %c0_1 = arith.constant 0 : index
    %c0_2 = arith.constant 0 : index
    %2 = vector.load %arg2[%c0_1, %c0_2] : memref<16x128xbf16, #tpu.memory_space<vmem>>, vector<16x128xbf16>
    %cst = arith.constant dense<0.000000e+00> : vector<304x128xf32>
    %3 = tpu.matmul %1, %2, %cst {dimension_numbers = #tpu.dot_dimension_numbers<[1], [0], [0], [1], [0, 0, 1, 1], [], []>} : vector<304x16xbf16>, vector<16x128xbf16>, vector<304x128xf32> -> vector<304x128xf32>
    %c0_3 = arith.constant 0 : index
    %c0_4 = arith.constant 0 : index
    %4 = vector.load %arg3[%c0_3, %c0_4] : memref<1x128xf32, #tpu.memory_space<vmem>>, vector<1x128xf32>
    %5 = vector.broadcast %4 : vector<1x128xf32> to vector<304x128xf32>
    %6 = arith.addf %3, %5 : vector<304x128xf32>
    %cst_5 = arith.constant 0.000000e+00 : f32
    %7 = vector.broadcast %cst_5 : f32 to vector<304x128xf32>
    %8 = arith.maximumf %6, %7 : vector<304x128xf32>
    %9 = arith.truncf %8 : vector<304x128xf32> to vector<304x128xbf16>
    %c0_6 = arith.constant 0 : index
    %c0_7 = arith.constant 0 : index
    %10 = vector.load %arg4[%c0_6, %c0_7] : memref<128x128xbf16, #tpu.memory_space<vmem>>, vector<128x128xbf16>
    %cst_8 = arith.constant dense<0.000000e+00> : vector<304x128xf32>
    %11 = tpu.matmul %9, %10, %cst_8 {dimension_numbers = #tpu.dot_dimension_numbers<[1], [0], [0], [1], [0, 0, 1, 1], [], []>} : vector<304x128xbf16>, vector<128x128xbf16>, vector<304x128xf32> -> vector<304x128xf32>
    %c0_9 = arith.constant 0 : index
    %c0_10 = arith.constant 0 : index
    %12 = vector.load %arg5[%c0_9, %c0_10] : memref<1x128xf32, #tpu.memory_space<vmem>>, vector<1x128xf32>
    %13 = vector.broadcast %12 : vector<1x128xf32> to vector<304x128xf32>
    %14 = arith.addf %11, %13 : vector<304x128xf32>
    %cst_11 = arith.constant 0.000000e+00 : f32
    %15 = vector.broadcast %cst_11 : f32 to vector<304x128xf32>
    %16 = arith.maximumf %14, %15 : vector<304x128xf32>
    %17 = arith.truncf %16 : vector<304x128xf32> to vector<304x128xbf16>
    %c0_12 = arith.constant 0 : index
    %c0_13 = arith.constant 0 : index
    %18 = vector.load %arg6[%c0_12, %c0_13] : memref<128x128xbf16, #tpu.memory_space<vmem>>, vector<128x128xbf16>
    %cst_14 = arith.constant dense<0.000000e+00> : vector<304x128xf32>
    %19 = tpu.matmul %17, %18, %cst_14 {dimension_numbers = #tpu.dot_dimension_numbers<[1], [0], [0], [1], [0, 0, 1, 1], [], []>} : vector<304x128xbf16>, vector<128x128xbf16>, vector<304x128xf32> -> vector<304x128xf32>
    %c0_15 = arith.constant 0 : index
    %c0_16 = arith.constant 0 : index
    %20 = vector.load %arg7[%c0_15, %c0_16] : memref<1x128xf32, #tpu.memory_space<vmem>>, vector<1x128xf32>
    %21 = vector.broadcast %20 : vector<1x128xf32> to vector<304x128xf32>
    %22 = arith.addf %19, %21 : vector<304x128xf32>
    %c0_17 = arith.constant 0 : index
    %c0_18 = arith.constant 0 : index
    %23 = vector.load %arg8[%c0_17, %c0_18] : memref<304x128xf32, #tpu.memory_space<vmem>>, vector<304x128xf32>
    tpu.vector_store %arg8[%c0_17, %c0_18], %22 {strides = array<i32>} : memref<304x128xf32, #tpu.memory_space<vmem>>, vector<304x128xf32>,
    return
  }
  func.func @transform_0(%arg0: i32) -> (i32, i32) {
    %c0_i32 = arith.constant 0 : i32
    %c0_i32_0 = arith.constant 0 : i32
    return %arg0, %c0_i32 : i32, i32
  }
  func.func @transform_1(%arg0: i32) -> (i32, i32) {
    %c0_i32 = arith.constant 0 : i32
    %c0_i32_0 = arith.constant 0 : i32
    %c0_i32_1 = arith.constant 0 : i32
    return %c0_i32, %c0_i32_0 : i32, i32
  }
  func.func @transform_2(%arg0: i32) -> (i32, i32) {
    %c0_i32 = arith.constant 0 : i32
    %c0_i32_0 = arith.constant 0 : i32
    %c0_i32_1 = arith.constant 0 : i32
    return %c0_i32, %c0_i32_0 : i32, i32
  }
  func.func @transform_3(%arg0: i32) -> (i32, i32) {
    %c0_i32 = arith.constant 0 : i32
    %c0_i32_0 = arith.constant 0 : i32
    %c0_i32_1 = arith.constant 0 : i32
    return %c0_i32, %c0_i32_0 : i32, i32
  }
  func.func @transform_4(%arg0: i32) -> (i32, i32) {
    %c0_i32 = arith.constant 0 : i32
    %c0_i32_0 = arith.constant 0 : i32
    %c0_i32_1 = arith.constant 0 : i32
    return %c0_i32, %c0_i32_0 : i32, i32
  }
  func.func @transform_5(%arg0: i32) -> (i32, i32) {
    %c0_i32 = arith.constant 0 : i32
    %c0_i32_0 = arith.constant 0 : i32
    %c0_i32_1 = arith.constant 0 : i32
    return %c0_i32, %c0_i32_0 : i32, i32
  }
  func.func @transform_6(%arg0: i32) -> (i32, i32) {
    %c0_i32 = arith.constant 0 : i32
    %c0_i32_0 = arith.constant 0 : i32
    %c0_i32_1 = arith.constant 0 : i32
    return %c0_i32, %c0_i32_0 : i32, i32
  }
  func.func @transform_7(%arg0: i32) -> (i32, i32) {
    %c0_i32 = arith.constant 0 : i32
    %c0_i32_0 = arith.constant 0 : i32
    return %arg0, %c0_i32 : i32, i32
  }
}

</mosaic_0001>

<llo_original>
// kernel: tpu_custom_call.1
$region0: #{tpu_custom_call.1}
  #allocation0 [shape = 'u32[]', space=smem, size = 0x4, offset = 0x4, fixed_abs, tag = 'smem constant byte address 0x4 - core index']
  #allocation1 [shape = 'u32[144,128]{1,0:T(1,128)}', space=vmem, size = 0x12000, scoped, tag = 'internal scratch']
  %s0 = inlined_call_operand.vmem [shape: f32[304,16], index: 0, kind: input, shape index: {}]
  %s1 = inlined_call_operand.vmem [shape: bf16[16,128], index: 1, kind: input, shape index: {}]
  %s2 = inlined_call_operand.vmem [shape: f32[1,128], index: 2, kind: input, shape index: {}]
  %s3 = inlined_call_operand.vmem [shape: bf16[128,128], index: 3, kind: input, shape index: {}]
  %s4 = inlined_call_operand.vmem [shape: f32[1,128], index: 4, kind: input, shape index: {}]
  %s5 = inlined_call_operand.vmem [shape: bf16[128,128], index: 5, kind: input, shape index: {}]
  %s6 = inlined_call_operand.vmem [shape: f32[1,128], index: 6, kind: input, shape index: {}]
  %s7 = inlined_call_operand.hbm [shape: f32[304,128], index: 7, kind: output, shape index: {}]
  %s8 = sld [smem:[#allocation0]]
  $region38: #{tpu_custom_call.1} parent=0
    _
  %s10 = ssub.s32 1, %s8
  %s11 = scalar_select 0, %s10, %s8
  $region1: #{tpu_custom_call.1} parent=0
    #allocation2 [shape = 'u8[155648]{0}', space=vmem, size = 0x26000, scoped, tag = 'output window, operand 0, single buffered']
    #allocation3 [shape = 's32[1]{0}', space=sflag, size = 0x4, scoped, tag = 'scoped memory for tpu_custom_call.1']
    %12 = vsyncpa [#allocation3], 0
    // Predicated region
    $region2: #{tpu_custom_call.1} parent=1 // pred_check
      _
    $region3: #{tpu_custom_call.1} parent=1 // pred_check_branch
      %14 = sbr.rel (0) target = $region5
    $region4: #{tpu_custom_call.1} parent=1 // pred_region
      _
    $region5: #{tpu_custom_call.1} parent=1 // pred_fallthru
      _
    // Predicated region
    $region6: #{tpu_custom_call.1} parent=1 // pred_check
      _
    $region7: #{tpu_custom_call.1} parent=1 // pred_check_branch
      %16 = sbr.rel (0) target = $region9
    $region8: #{tpu_custom_call.1} parent=1 // pred_region
      _
    $region9: #{tpu_custom_call.1} parent=1 // pred_fallthru
      _
    // Predicated region
    $region10: #{tpu_custom_call.1} parent=1 // pred_check
      _
    $region11: #{tpu_custom_call.1} parent=1 // pred_check_branch
      %18 = sbr.rel (0) target = $region13
    $region12: #{tpu_custom_call.1} parent=1 // pred_region
      _
    $region13: #{tpu_custom_call.1} parent=1 // pred_fallthru
      _
    // Predicated region
    $region14: #{tpu_custom_call.1} parent=1 // pred_check
      _
    $region15: #{tpu_custom_call.1} parent=1 // pred_check_branch
      %20 = sbr.rel (0) target = $region17
    $region16: #{tpu_custom_call.1} parent=1 // pred_region
      _
    $region17: #{tpu_custom_call.1} parent=1 // pred_fallthru
      _
    // Predicated region
    $region18: #{tpu_custom_call.1} parent=1 // pred_check
      _
    $region19: #{tpu_custom_call.1} parent=1 // pred_check_branch
      %22 = sbr.rel (0) target = $region21
    $region20: #{tpu_custom_call.1} parent=1 // pred_region
      _
    $region21: #{tpu_custom_call.1} parent=1 // pred_fallthru
      _
    // Predicated region
    $region22: #{tpu_custom_call.1} parent=1 // pred_check
      _
    $region23: #{tpu_custom_call.1} parent=1 // pred_check_branch
      %24 = sbr.rel (0) target = $region25
    $region24: #{tpu_custom_call.1} parent=1 // pred_region
      _
    $region25: #{tpu_custom_call.1} parent=1 // pred_fallthru
      _
    // Predicated region
    $region26: #{tpu_custom_call.1} parent=1 // pred_check
      _
    $region27: #{tpu_custom_call.1} parent=1 // pred_check_branch
      %26 = sbr.rel (0) target = $region29
    $region28: #{tpu_custom_call.1} parent=1 // pred_region
      _
    $region29: #{tpu_custom_call.1} parent=1 // pred_fallthru
      _
    %v28 = vld [vmem:[%s0] sm:$0xff]
    %v29 = vld [vmem:[%s0 + $0x8] sm:$0xff]
    %v30 = vld [vmem:[%s0 + $0x10] sm:$0xff]
    %v31 = vld [vmem:[%s0 + $0x18] sm:$0xff]
    %v32 = vld [vmem:[%s0 + $0x20] sm:$0xff]
    %v33 = vld [vmem:[%s0 + $0x28] sm:$0xff]
    %v34 = vld [vmem:[%s0 + $0x30] sm:$0xff]
    %v35 = vld [vmem:[%s0 + $0x38] sm:$0xff]
    %v36 = vld [vmem:[%s0 + $0x40] sm:$0xff]
    %v37 = vld [vmem:[%s0 + $0x48] sm:$0xff]
    %v38 = vld [vmem:[%s0 + $0x50] sm:$0xff]
    %v39 = vld [vmem:[%s0 + $0x58] sm:$0xff]
    %v40 = vld [vmem:[%s0 + $0x60] sm:$0xff]
    %v41 = vld [vmem:[%s0 + $0x68] sm:$0xff]
    %v42 = vld [vmem:[%s0 + $0x70] sm:$0xff]
    %v43 = vld [vmem:[%s0 + $0x78] sm:$0xff]
    %v44 = vld [vmem:[%s0 + $0x80] sm:$0xff]
    %v45 = vld [vmem:[%s0 + $0x88] sm:$0xff]
    %v46 = vld [vmem:[%s0 + $0x90] sm:$0xff]
    %v47 = vld [vmem:[%s0 + $0x98] sm:$0xff]
    %v48 = vld [vmem:[%s0 + $0xa0] sm:$0xff]
    %v49 = vld [vmem:[%s0 + $0xa8] sm:$0xff]
    %v50 = vld [vmem:[%s0 + $0xb0] sm:$0xff]
    %v51 = vld [vmem:[%s0 + $0xb8] sm:$0xff]
    %v52 = vld [vmem:[%s0 + $0xc0] sm:$0xff]
    %v53 = vld [vmem:[%s0 + $0xc8] sm:$0xff]
    %v54 = vld [vmem:[%s0 + $0xd0] sm:$0xff]
    %v55 = vld [vmem:[%s0 + $0xd8] sm:$0xff]
    %v56 = vld [vmem:[%s0 + $0xe0] sm:$0xff]
    %v57 = vld [vmem:[%s0 + $0xe8] sm:$0xff]
    %v58 = vld [vmem:[%s0 + $0xf0] sm:$0xff]
    %v59 = vld [vmem:[%s0 + $0xf8] sm:$0xff]
    %v60 = vld [vmem:[%s0 + $0x100] sm:$0xff]
    %v61 = vld [vmem:[%s0 + $0x108] sm:$0xff]
    %v62 = vld [vmem:[%s0 + $0x110] sm:$0xff]
    %v63 = vld [vmem:[%s0 + $0x118] sm:$0xff]
    %v64 = vld [vmem:[%s0 + $0x120] sm:$0xff]
    %v65 = vld [vmem:[%s0 + $0x128] sm:$0xff]
    %v66 = vpack.c.bf16 %v29, %v28
    %v67 = vpack.c.bf16 %v31, %v30
    %v68 = vpack.c.bf16 %v33, %v32
    %v69 = vpack.c.bf16 %v35, %v34
    %v70 = vpack.c.bf16 %v37, %v36
    %v71 = vpack.c.bf16 %v39, %v38
    %v72 = vpack.c.bf16 %v41, %v40
    %v73 = vpack.c.bf16 %v43, %v42
    %v74 = vpack.c.bf16 %v45, %v44
    %v75 = vpack.c.bf16 %v47, %v46
    %v76 = vpack.c.bf16 %v49, %v48
    %v77 = vpack.c.bf16 %v51, %v50
    %v78 = vpack.c.bf16 %v53, %v52
    %v79 = vpack.c.bf16 %v55, %v54
    %v80 = vpack.c.bf16 %v57, %v56
    %v81 = vpack.c.bf16 %v59, %v58
    %v82 = vpack.c.bf16 %v61, %v60
    %v83 = vpack.c.bf16 %v63, %v62
    %v84 = vpack.c.bf16 %v65, %v64
    %v85 = vld [vmem:[%s1] sm:$0xf]
    %v86 = vld [vmem:[%s1 + $0x4] sm:$0xf]
    %v87 = vld [vmem:[%s2] sm:$0x1]
    %v89 = vlaneseq
    %v90 = vshrl.u32 %v89, 7
    %v91 = vsub.s32 0, %v90
    %v92 = vrot.slane %v87, %v91
    %v96 = vunpack.c.l.b16 %v85
    %v97 = vunpack.c.l.b16 %v86
    %v98 = vpack.c.b16 %v97, %v96
    %vm100 = vcmask 130048
    %v102 = vsel %vm100, %v66, 0
    %v105 = vsel %vm100, %v67, 0
    %v108 = vsel %vm100, %v68, 0
    %v111 = vsel %vm100, %v69, 0
    %v114 = vsel %vm100, %v70, 0
    %v117 = vsel %vm100, %v71, 0
    %v120 = vsel %vm100, %v72, 0
    %v123 = vsel %vm100, %v73, 0
    %v126 = vsel %vm100, %v74, 0
    %v129 = vsel %vm100, %v75, 0
    %v132 = vsel %vm100, %v76, 0
    %v135 = vsel %vm100, %v77, 0
    %v138 = vsel %vm100, %v78, 0
    %v141 = vsel %vm100, %v79, 0
    %v144 = vsel %vm100, %v80, 0
    %v147 = vsel %vm100, %v81, 0
    %v150 = vsel %vm100, %v82, 0
    %v153 = vsel %vm100, %v83, 0
    %v156 = vsel %vm100, %v84, 0
    %158 = vmatprep.subr.bf16.mxu0 0
    %159 = vmatpush1.bf16.msra.mxu0 %v98
    %160 = vmatprep.subr.bf16.mxu0 0
    %161 = vmatpush1.bf16.msra.mxu0 0
    %162 = vmatprep.subr.bf16.mxu0 0
    %163 = vmatpush1.bf16.msra.mxu0 0
    %164 = vmatprep.subr.bf16.mxu0 0
    %165 = vmatpush1.bf16.msra.mxu0 0
    %166 = vmatprep.subr.bf16.mxu0 0
    %167 = vmatpush1.bf16.msra.mxu0 0
    %168 = vmatprep.subr.bf16.mxu0 0
    %169 = vmatpush1.bf16.msra.mxu0 0
    %170 = vmatprep.subr.bf16.mxu0 0
    %171 = vmatpush1.bf16.msra.mxu0 0
    %172 = vmatprep.subr.bf16.mxu0 0
    %173 = vmatpush1.bf16.msra.mxu0 0
    %174 = vmatprep.subr.bf16.mxu0 0
    %175 = vmatpush1.bf16.msra.mxu0 0
    %176 = vmatprep.subr.bf16.mxu0 0
    %177 = vmatpush1.bf16.msra.mxu0 0
    %178 = vmatprep.subr.bf16.mxu0 0
    %179 = vmatpush1.bf16.msra.mxu0 0
    %180 = vmatprep.subr.bf16.mxu0 0
    %181 = vmatpush1.bf16.msra.mxu0 0
    %182 = vmatprep.subr.bf16.mxu0 0
    %183 = vmatpush1.bf16.msra.mxu0 0
    %184 = vmatprep.subr.bf16.mxu0 0
    %185 = vmatpush1.bf16.msra.mxu0 0
    %186 = vmatprep.subr.bf16.mxu0 0
    %187 = vmatpush1.bf16.msra.mxu0 0
    %188 = vmatprep.subr.bf16.mxu0 0
    %189 = vmatpush1.bf16.msra.mxu0 0
    %190 = vmatprep.mubr.bf16.mxu0 0
    %191 = vmatmul.mubr.bf16.gmra.mrb[0].mxu0 %v102
    %v192 = vpop.f32.mrb[0].mxu0
    %v193 = vadd.f32 %v92, %v192
    %v194 = vpop.f32.mrb[0].mxu0
    %v195 = vpop.f32.mrb[0].mxu0
    %v196 = vadd.f32 %v92, %v195
    %v197 = vpop.f32.mrb[0].mxu0
    %198 = vmatprep.mubr.bf16.mxu0 0
    %199 = vmatmul.mubr.bf16.gmra.mrb[0].mxu0 %v105
    %v200 = vpop.f32.mrb[0].mxu0
    %v201 = vadd.f32 %v92, %v200
    %v202 = vpop.f32.mrb[0].mxu0
    %v203 = vpop.f32.mrb[0].mxu0
    %v204 = vadd.f32 %v92, %v203
    %v205 = vpop.f32.mrb[0].mxu0
    %206 = vmatprep.mubr.bf16.mxu0 0
    %207 = vmatmul.mubr.bf16.gmra.mrb[0].mxu0 %v108
    %v208 = vpop.f32.mrb[0].mxu0
    %v209 = vadd.f32 %v92, %v208
    %v210 = vpop.f32.mrb[0].mxu0
    %v211 = vpop.f32.mrb[0].mxu0
    %v212 = vadd.f32 %v92, %v211
    %v213 = vpop.f32.mrb[0].mxu0
    %214 = vmatprep.mubr.bf16.mxu0 0
    %215 = vmatmul.mubr.bf16.gmra.mrb[0].mxu0 %v111
    %v216 = vpop.f32.mrb[0].mxu0
    %v217 = vadd.f32 %v92, %v216
    %v218 = vpop.f32.mrb[0].mxu0
    %v219 = vpop.f32.mrb[0].mxu0
    %v220 = vadd.f32 %v92, %v219
    %v221 = vpop.f32.mrb[0].mxu0
    %222 = vmatprep.mubr.bf16.mxu0 0
    %223 = vmatmul.mubr.bf16.gmra.mrb[0].mxu0 %v114
    %v224 = vpop.f32.mrb[0].mxu0
    %v225 = vadd.f32 %v92, %v224
    %v226 = vpop.f32.mrb[0].mxu0
    %v227 = vpop.f32.mrb[0].mxu0
    %v228 = vadd.f32 %v92, %v227
    %v229 = vpop.f32.mrb[0].mxu0
    %230 = vmatprep.mubr.bf16.mxu0 0
    %231 = vmatmul.mubr.bf16.gmra.mrb[0].mxu0 %v117
    %v232 = vpop.f32.mrb[0].mxu0
    %v233 = vadd.f32 %v92, %v232
    %v234 = vpop.f32.mrb[0].mxu0
    %v235 = vpop.f32.mrb[0].mxu0
    %v236 = vadd.f32 %v92, %v235
    %v237 = vpop.f32.mrb[0].mxu0
    %238 = vmatprep.mubr.bf16.mxu0 0
    %239 = vmatmul.mubr.bf16.gmra.mrb[0].mxu0 %v120
    %v240 = vpop.f32.mrb[0].mxu0
    %v241 = vadd.f32 %v92, %v240
    %v242 = vpop.f32.mrb[0].mxu0
    %v243 = vpop.f32.mrb[0].mxu0
    %v244 = vadd.f32 %v92, %v243
    %v245 = vpop.f32.mrb[0].mxu0
    %246 = vmatprep.mubr.bf16.mxu0 0
    %247 = vmatmul.mubr.bf16.gmra.mrb[0].mxu0 %v123
    %v248 = vpop.f32.mrb[0].mxu0
    %v249 = vadd.f32 %v92, %v248
    %v250 = vpop.f32.mrb[0].mxu0
    %v251 = vpop.f32.mrb[0].mxu0
    %v252 = vadd.f32 %v92, %v251
    %v253 = vpop.f32.mrb[0].mxu0
    %254 = vmatprep.mubr.bf16.mxu0 0
    %255 = vmatmul.mubr.bf16.gmra.mrb[0].mxu0 %v126
    %v256 = vpop.f32.mrb[0].mxu0
    %v257 = vadd.f32 %v92, %v256
    %v258 = vpop.f32.mrb[0].mxu0
    %v259 = vpop.f32.mrb[0].mxu0
    %v260 = vadd.f32 %v92, %v259
    %v261 = vpop.f32.mrb[0].mxu0
    %262 = vmatprep.mubr.bf16.mxu0 0
    %263 = vmatmul.mubr.bf16.gmra.mrb[0].mxu0 %v129
    %v264 = vpop.f32.mrb[0].mxu0
    %v265 = vadd.f32 %v92, %v264
    %v266 = vpop.f32.mrb[0].mxu0
    %v267 = vpop.f32.mrb[0].mxu0
    %v268 = vadd.f32 %v92, %v267
    %v269 = vpop.f32.mrb[0].mxu0
    %270 = vmatprep.mubr.bf16.mxu0 0
    %271 = vmatmul.mubr.bf16.gmra.mrb[0].mxu0 %v132
    %v272 = vpop.f32.mrb[0].mxu0
    %v273 = vadd.f32 %v92, %v272
    %v274 = vpop.f32.mrb[0].mxu0
    %v275 = vpop.f32.mrb[0].mxu0
    %v276 = vadd.f32 %v92, %v275
    %v277 = vpop.f32.mrb[0].mxu0
    %278 = vmatprep.mubr.bf16.mxu0 0
    %279 = vmatmul.mubr.bf16.gmra.mrb[0].mxu0 %v135
    %v280 = vpop.f32.mrb[0].mxu0
    %v281 = vadd.f32 %v92, %v280
    %v282 = vpop.f32.mrb[0].mxu0
    %v283 = vpop.f32.mrb[0].mxu0
    %v284 = vadd.f32 %v92, %v283
    %v285 = vpop.f32.mrb[0].mxu0
    %286 = vmatprep.mubr.bf16.mxu0 0
    %287 = vmatmul.mubr.bf16.gmra.mrb[0].mxu0 %v138
    %v288 = vpop.f32.mrb[0].mxu0
    %v289 = vadd.f32 %v92, %v288
    %v290 = vpop.f32.mrb[0].mxu0
    %v291 = vpop.f32.mrb[0].mxu0
    %v292 = vadd.f32 %v92, %v291
    %v293 = vpop.f32.mrb[0].mxu0
    %294 = vmatprep.mubr.bf16.mxu0 0
    %295 = vmatmul.mubr.bf16.gmra.mrb[0].mxu0 %v141
    %v296 = vpop.f32.mrb[0].mxu0
    %v297 = vadd.f32 %v92, %v296
    %v298 = vpop.f32.mrb[0].mxu0
    %v299 = vpop.f32.mrb[0].mxu0
    %v300 = vadd.f32 %v92, %v299
    %v301 = vpop.f32.mrb[0].mxu0
    %302 = vmatprep.mubr.bf16.mxu0 0
    %303 = vmatmul.mubr.bf16.gmra.mrb[0].mxu0 %v144
    %v304 = vpop.f32.mrb[0].mxu0
    %v305 = vadd.f32 %v92, %v304
    %v306 = vpop.f32.mrb[0].mxu0
    %v307 = vpop.f32.mrb[0].mxu0
    %v308 = vadd.f32 %v92, %v307
    %v309 = vpop.f32.mrb[0].mxu0
    %310 = vmatprep.mubr.bf16.mxu0 0
    %311 = vmatmul.mubr.bf16.gmra.mrb[0].mxu0 %v147
    %v312 = vpop.f32.mrb[0].mxu0
    %v313 = vadd.f32 %v92, %v312
    %v314 = vpop.f32.mrb[0].mxu0
    %v315 = vpop.f32.mrb[0].mxu0
    %v316 = vadd.f32 %v92, %v315
    %v317 = vpop.f32.mrb[0].mxu0
    %318 = vmatprep.mubr.bf16.mxu0 0
    %319 = vmatmul.mubr.bf16.gmra.mrb[0].mxu0 %v150
    %v320 = vpop.f32.mrb[0].mxu0
    %v321 = vadd.f32 %v92, %v320
    %v322 = vpop.f32.mrb[0].mxu0
    %v323 = vpop.f32.mrb[0].mxu0
    %v324 = vadd.f32 %v92, %v323
    %v325 = vpop.f32.mrb[0].mxu0
    %326 = vmatprep.mubr.bf16.mxu0 0
    %327 = vmatmul.mubr.bf16.gmra.mrb[0].mxu0 %v153
    %v328 = vpop.f32.mrb[0].mxu0
    %v329 = vadd.f32 %v92, %v328
    %v330 = vpop.f32.mrb[0].mxu0
    %v331 = vpop.f32.mrb[0].mxu0
    %v332 = vadd.f32 %v92, %v331
    %v333 = vpop.f32.mrb[0].mxu0
    %334 = vmatprep.mubr.bf16.mxu0 0
    %335 = vmatmul.mubr.bf16.gmra.mrb[0].mxu0 %v156
    %v336 = vpop.f32.mrb[0].mxu0
    %v337 = vadd.f32 %v92, %v336
    %v338 = vpop.f32.mrb[0].mxu0
    %v339 = vpop.f32.mrb[0].mxu0
    %v340 = vadd.f32 %v92, %v339
    %v341 = vpop.f32.mrb[0].mxu0
    %342 = vdwg.mxu0
    %v343 = vmax.f32 %v193, 0.0
    %v344 = vmax.f32 %v196, 0.0
    %v345 = vmax.f32 %v201, 0.0
    %v346 = vmax.f32 %v204, 0.0
    %v347 = vmax.f32 %v209, 0.0
    %v348 = vmax.f32 %v212, 0.0
    %v349 = vmax.f32 %v217, 0.0
    %v350 = vmax.f32 %v220, 0.0
    %v351 = vmax.f32 %v225, 0.0
    %v352 = vmax.f32 %v228, 0.0
    %v353 = vmax.f32 %v233, 0.0
    %v354 = vmax.f32 %v236, 0.0
    %v355 = vmax.f32 %v241, 0.0
    %v356 = vmax.f32 %v244, 0.0
    %v357 = vmax.f32 %v249, 0.0
    %v358 = vmax.f32 %v252, 0.0
    %v359 = vmax.f32 %v257, 0.0
    %v360 = vmax.f32 %v260, 0.0
    %v361 = vmax.f32 %v265, 0.0
    %v362 = vmax.f32 %v268, 0.0
    %v363 = vmax.f32 %v273, 0.0
    %v364 = vmax.f32 %v276, 0.0
    %v365 = vmax.f32 %v281, 0.0
    %v366 = vmax.f32 %v284, 0.0
    %v367 = vmax.f32 %v289, 0.0
    %v368 = vmax.f32 %v292, 0.0
    %v369 = vmax.f32 %v297, 0.0
    %v370 = vmax.f32 %v300, 0.0
    %v371 = vmax.f32 %v305, 0.0
    %v372 = vmax.f32 %v308, 0.0
    %v373 = vmax.f32 %v313, 0.0
    %v374 = vmax.f32 %v316, 0.0
    %v375 = vmax.f32 %v321, 0.0
    %v376 = vmax.f32 %v324, 0.0
    %v377 = vmax.f32 %v329, 0.0
    %v378 = vmax.f32 %v332, 0.0
    %v379 = vmax.f32 %v337, 0.0
    %v380 = vmax.f32 %v340, 0.0
    %v381 = vpack.c.bf16 %v344, %v343
    %v382 = vpack.c.bf16 %v346, %v345
    %v383 = vpack.c.bf16 %v348, %v347
    %v384 = vpack.c.bf16 %v350, %v349
    %v385 = vpack.c.bf16 %v352, %v351
    %v386 = vpack.c.bf16 %v354, %v353
    %v387 = vpack.c.bf16 %v356, %v355
    %v388 = vpack.c.bf16 %v358, %v357
    %v389 = vpack.c.bf16 %v360, %v359
    %v390 = vpack.c.bf16 %v362, %v361
    %v391 = vpack.c.bf16 %v364, %v363
    %v392 = vpack.c.bf16 %v366, %v365
    %v393 = vpack.c.bf16 %v368, %v367
    %v394 = vpack.c.bf16 %v370, %v369
    %v395 = vpack.c.bf16 %v372, %v371
    %v396 = vpack.c.bf16 %v374, %v373
    %v397 = vpack.c.bf16 %v376, %v375
    %v398 = vpack.c.bf16 %v378, %v377
    %v399 = vpack.c.bf16 %v380, %v379
    %v400 = vld [vmem:[%s3] sm:$0xf]
    %v401 = vld [vmem:[%s3 + $0x4] sm:$0xf]
    %v402 = vld [vmem:[%s3 + $0x8] sm:$0xf]
    %v403 = vld [vmem:[%s3 + $0xc] sm:$0xf]
    %v404 = vld [vmem:[%s3 + $0x10] sm:$0xf]
    %v405 = vld [vmem:[%s3 + $0x14] sm:$0xf]
    %v406 = vld [vmem:[%s3 + $0x18] sm:$0xf]
    %v407 = vld [vmem:[%s3 + $0x1c] sm:$0xf]
    %v408 = vld [vmem:[%s3 + $0x20] sm:$0xf]
    %v409 = vld [vmem:[%s3 + $0x24] sm:$0xf]
    %v410 = vld [vmem:[%s3 + $0x28] sm:$0xf]
    %v411 = vld [vmem:[%s3 + $0x2c] sm:$0xf]
    %v412 = vld [vmem:[%s3 + $0x30] sm:$0xf]
    %v413 = vld [vmem:[%s3 + $0x34] sm:$0xf]
    %v414 = vld [vmem:[%s3 + $0x38] sm:$0xf]
    %v415 = vld [vmem:[%s3 + $0x3c] sm:$0xf]
    %v416 = vld [vmem:[%s4] sm:$0x1]
    %v418 = vlaneseq
    %v419 = vshrl.u32 %v418, 7
    %v420 = vsub.s32 0, %v419
    %v421 = vrot.slane %v416, %v420
    %v439 = vunpack.c.l.b16 %v400
    %v440 = vunpack.c.l.b16 %v401
    %v441 = vunpack.c.l.b16 %v402
    %v442 = vunpack.c.l.b16 %v403
    %v443 = vunpack.c.l.b16 %v404
    %v444 = vunpack.c.l.b16 %v405
    %v445 = vunpack.c.l.b16 %v406
    %v446 = vunpack.c.l.b16 %v407
    %v447 = vunpack.c.l.b16 %v408
    %v448 = vunpack.c.l.b16 %v409
    %v449 = vunpack.c.l.b16 %v410
    %v450 = vunpack.c.l.b16 %v411
    %v451 = vunpack.c.l.b16 %v412
    %v452 = vunpack.c.l.b16 %v413
    %v453 = vunpack.c.l.b16 %v414
    %v454 = vunpack.c.l.b16 %v415
    %v455 = vpack.c.b16 %v440, %v439
    %v456 = vpack.c.b16 %v442, %v441
    %v457 = vpack.c.b16 %v444, %v443
    %v458 = vpack.c.b16 %v446, %v445
    %v459 = vpack.c.b16 %v448, %v447
    %v460 = vpack.c.b16 %v450, %v449
    %v461 = vpack.c.b16 %v452, %v451
    %v462 = vpack.c.b16 %v454, %v453
    %471 = vmatprep.subr.bf16.mxu0 0
    %472 = vmatpush1.bf16.msra.mxu0 %v455
    %473 = vmatprep.subr.bf16.mxu0 0
    %474 = vmatpush1.bf16.msra.mxu0 %v456
    %475 = vmatprep.subr.bf16.mxu0 0
    %476 = vmatpush1.bf16.msra.mxu0 %v457
    %477 = vmatprep.subr.bf16.mxu0 0
    %478 = vmatpush1.bf16.msra.mxu0 %v458
    %479 = vmatprep.subr.bf16.mxu0 0
    %480 = vmatpush1.bf16.msra.mxu0 %v459
    %481 = vmatprep.subr.bf16.mxu0 0
    %482 = vmatpush1.bf16.msra.mxu0 %v460
    %483 = vmatprep.subr.bf16.mxu0 0
    %484 = vmatpush1.bf16.msra.mxu0 %v461
    %485 = vmatprep.subr.bf16.mxu0 0
    %486 = vmatpush1.bf16.msra.mxu0 %v462
    %487 = vmatprep.subr.bf16.mxu0 0
    %488 = vmatpush1.bf16.msra.mxu0 0
    %489 = vmatprep.subr.bf16.mxu0 0
    %490 = vmatpush1.bf16.msra.mxu0 0
    %491 = vmatprep.subr.bf16.mxu0 0
    %492 = vmatpush1.bf16.msra.mxu0 0
    %493 = vmatprep.subr.bf16.mxu0 0
    %494 = vmatpush1.bf16.msra.mxu0 0
    %495 = vmatprep.subr.bf16.mxu0 0
    %496 = vmatpush1.bf16.msra.mxu0 0
    %497 = vmatprep.subr.bf16.mxu0 0
    %498 = vmatpush1.bf16.msra.mxu0 0
    %499 = vmatprep.subr.bf16.mxu0 0
    %500 = vmatpush1.bf16.msra.mxu0 0
    %501 = vmatprep.subr.bf16.mxu0 0
    %502 = vmatpush1.bf16.msra.mxu0 0
    %503 = vmatprep.mubr.bf16.mxu0 0
    %504 = vmatmul.mubr.bf16.gmra.mrb[0].mxu0 %v381
    %v505 = vpop.f32.mrb[0].mxu0
    %v506 = vadd.f32 %v421, %v505
    %v507 = vpop.f32.mrb[0].mxu0
    %v508 = vpop.f32.mrb[0].mxu0
    %v509 = vadd.f32 %v421, %v508
    %v510 = vpop.f32.mrb[0].mxu0
    %511 = vmatprep.mubr.bf16.mxu0 0
    %512 = vmatmul.mubr.bf16.gmra.mrb[0].mxu0 %v382
    %v513 = vpop.f32.mrb[0].mxu0
    %v514 = vadd.f32 %v421, %v513
    %v515 = vpop.f32.mrb[0].mxu0
    %v516 = vpop.f32.mrb[0].mxu0
    %v517 = vadd.f32 %v421, %v516
    %v518 = vpop.f32.mrb[0].mxu0
    %519 = vmatprep.mubr.bf16.mxu0 0
    %520 = vmatmul.mubr.bf16.gmra.mrb[0].mxu0 %v383
    %v521 = vpop.f32.mrb[0].mxu0
    %v522 = vadd.f32 %v421, %v521
    %v523 = vpop.f32.mrb[0].mxu0
    %v524 = vpop.f32.mrb[0].mxu0
    %v525 = vadd.f32 %v421, %v524
    %v526 = vpop.f32.mrb[0].mxu0
    %527 = vmatprep.mubr.bf16.mxu0 0
    %528 = vmatmul.mubr.bf16.gmra.mrb[0].mxu0 %v384
    %v529 = vpop.f32.mrb[0].mxu0
    %v530 = vadd.f32 %v421, %v529
    %v531 = vpop.f32.mrb[0].mxu0
    %v532 = vpop.f32.mrb[0].mxu0
    %v533 = vadd.f32 %v421, %v532
    %v534 = vpop.f32.mrb[0].mxu0
    %535 = vmatprep.mubr.bf16.mxu0 0
    %536 = vmatmul.mubr.bf16.gmra.mrb[0].mxu0 %v385
    %v537 = vpop.f32.mrb[0].mxu0
    %v538 = vadd.f32 %v421, %v537
    %v539 = vpop.f32.mrb[0].mxu0
    %v540 = vpop.f32.mrb[0].mxu0
    %v541 = vadd.f32 %v421, %v540
    %v542 = vpop.f32.mrb[0].mxu0
    %543 = vmatprep.mubr.bf16.mxu0 0
    %544 = vmatmul.mubr.bf16.gmra.mrb[0].mxu0 %v386
    %v545 = vpop.f32.mrb[0].mxu0
    %v546 = vadd.f32 %v421, %v545
    %v547 = vpop.f32.mrb[0].mxu0
    %v548 = vpop.f32.mrb[0].mxu0
    %v549 = vadd.f32 %v421, %v548
    %v550 = vpop.f32.mrb[0].mxu0
    %551 = vmatprep.mubr.bf16.mxu0 0
    %552 = vmatmul.mubr.bf16.gmra.mrb[0].mxu0 %v387
    %v553 = vpop.f32.mrb[0].mxu0
    %v554 = vadd.f32 %v421, %v553
    %v555 = vpop.f32.mrb[0].mxu0
    %v556 = vpop.f32.mrb[0].mxu0
    %v557 = vadd.f32 %v421, %v556
    %v558 = vpop.f32.mrb[0].mxu0
    %559 = vmatprep.mubr.bf16.mxu0 0
    %560 = vmatmul.mubr.bf16.gmra.mrb[0].mxu0 %v388
    %v561 = vpop.f32.mrb[0].mxu0
    %v562 = vadd.f32 %v421, %v561
    %v563 = vpop.f32.mrb[0].mxu0
    %v564 = vpop.f32.mrb[0].mxu0
    %v565 = vadd.f32 %v421, %v564
    %v566 = vpop.f32.mrb[0].mxu0
    %567 = vmatprep.mubr.bf16.mxu0 0
    %568 = vmatmul.mubr.bf16.gmra.mrb[0].mxu0 %v389
    %v569 = vpop.f32.mrb[0].mxu0
    %v570 = vadd.f32 %v421, %v569
    %v571 = vpop.f32.mrb[0].mxu0
    %v572 = vpop.f32.mrb[0].mxu0
    %v573 = vadd.f32 %v421, %v572
    %v574 = vpop.f32.mrb[0].mxu0
    %575 = vmatprep.mubr.bf16.mxu0 0
    %576 = vmatmul.mubr.bf16.gmra.mrb[0].mxu0 %v390
    %v577 = vpop.f32.mrb[0].mxu0
    %v578 = vadd.f32 %v421, %v577
    %v579 = vpop.f32.mrb[0].mxu0
    %v580 = vpop.f32.mrb[0].mxu0
    %v581 = vadd.f32 %v421, %v580
    %v582 = vpop.f32.mrb[0].mxu0
    %583 = vmatprep.mubr.bf16.mxu0 0
    %584 = vmatmul.mubr.bf16.gmra.mrb[0].mxu0 %v391
    %v585 = vpop.f32.mrb[0].mxu0
    %v586 = vadd.f32 %v421, %v585
    %v587 = vpop.f32.mrb[0].mxu0
    %v588 = vpop.f32.mrb[0].mxu0
    %v589 = vadd.f32 %v421, %v588
    %v590 = vpop.f32.mrb[0].mxu0
    %591 = vmatprep.mubr.bf16.mxu0 0
    %592 = vmatmul.mubr.bf16.gmra.mrb[0].mxu0 %v392
    %v593 = vpop.f32.mrb[0].mxu0
    %v594 = vadd.f32 %v421, %v593
    %v595 = vpop.f32.mrb[0].mxu0
    %v596 = vpop.f32.mrb[0].mxu0
    %v597 = vadd.f32 %v421, %v596
    %v598 = vpop.f32.mrb[0].mxu0
    %599 = vmatprep.mubr.bf16.mxu0 0
    %600 = vmatmul.mubr.bf16.gmra.mrb[0].mxu0 %v393
    %v601 = vpop.f32.mrb[0].mxu0
    %v602 = vadd.f32 %v421, %v601
    %v603 = vpop.f32.mrb[0].mxu0
    %v604 = vpop.f32.mrb[0].mxu0
    %v605 = vadd.f32 %v421, %v604
    %v606 = vpop.f32.mrb[0].mxu0
    %607 = vmatprep.mubr.bf16.mxu0 0
    %608 = vmatmul.mubr.bf16.gmra.mrb[0].mxu0 %v394
    %v609 = vpop.f32.mrb[0].mxu0
    %v610 = vadd.f32 %v421, %v609
    %v611 = vpop.f32.mrb[0].mxu0
    %v612 = vpop.f32.mrb[0].mxu0
    %v613 = vadd.f32 %v421, %v612
    %v614 = vpop.f32.mrb[0].mxu0
    %615 = vmatprep.mubr.bf16.mxu0 0
    %616 = vmatmul.mubr.bf16.gmra.mrb[0].mxu0 %v395
    %v617 = vpop.f32.mrb[0].mxu0
    %v618 = vadd.f32 %v421, %v617
    %v619 = vpop.f32.mrb[0].mxu0
    %v620 = vpop.f32.mrb[0].mxu0
    %v621 = vadd.f32 %v421, %v620
    %v622 = vpop.f32.mrb[0].mxu0
    %623 = vmatprep.mubr.bf16.mxu0 0
    %624 = vmatmul.mubr.bf16.gmra.mrb[0].mxu0 %v396
    %v625 = vpop.f32.mrb[0].mxu0
    %v626 = vadd.f32 %v421, %v625
    %v627 = vpop.f32.mrb[0].mxu0
    %v628 = vpop.f32.mrb[0].mxu0
    %v629 = vadd.f32 %v421, %v628
    %v630 = vpop.f32.mrb[0].mxu0
    %631 = vmatprep.mubr.bf16.mxu0 0
    %632 = vmatmul.mubr.bf16.gmra.mrb[0].mxu0 %v397
    %v633 = vpop.f32.mrb[0].mxu0
    %v634 = vadd.f32 %v421, %v633
    %v635 = vpop.f32.mrb[0].mxu0
    %v636 = vpop.f32.mrb[0].mxu0
    %v637 = vadd.f32 %v421, %v636
    %v638 = vpop.f32.mrb[0].mxu0
    %639 = vmatprep.mubr.bf16.mxu0 0
    %640 = vmatmul.mubr.bf16.gmra.mrb[0].mxu0 %v398
    %v641 = vpop.f32.mrb[0].mxu0
    %v642 = vadd.f32 %v421, %v641
    %v643 = vpop.f32.mrb[0].mxu0
    %v644 = vpop.f32.mrb[0].mxu0
    %v645 = vadd.f32 %v421, %v644
    %v646 = vpop.f32.mrb[0].mxu0
    %647 = vmatprep.mubr.bf16.mxu0 0
    %648 = vmatmul.mubr.bf16.gmra.mrb[0].mxu0 %v399
    %v649 = vpop.f32.mrb[0].mxu0
    %v650 = vadd.f32 %v421, %v649
    %v651 = vpop.f32.mrb[0].mxu0
    %v652 = vpop.f32.mrb[0].mxu0
    %v653 = vadd.f32 %v421, %v652
    %v654 = vpop.f32.mrb[0].mxu0
    %655 = vdwg.mxu0
    %v656 = vmax.f32 %v506, 0.0
    %v657 = vmax.f32 %v509, 0.0
    %v658 = vmax.f32 %v514, 0.0
    %v659 = vmax.f32 %v517, 0.0
    %v660 = vmax.f32 %v522, 0.0
    %v661 = vmax.f32 %v525, 0.0
    %v662 = vmax.f32 %v530, 0.0
    %v663 = vmax.f32 %v533, 0.0
    %v664 = vmax.f32 %v538, 0.0
    %v665 = vmax.f32 %v541, 0.0
    %v666 = vmax.f32 %v546, 0.0
    %v667 = vmax.f32 %v549, 0.0
    %v668 = vmax.f32 %v554, 0.0
    %v669 = vmax.f32 %v557, 0.0
    %v670 = vmax.f32 %v562, 0.0
    %v671 = vmax.f32 %v565, 0.0
    %v672 = vmax.f32 %v570, 0.0
    %v673 = vmax.f32 %v573, 0.0
    %v674 = vmax.f32 %v578, 0.0
    %v675 = vmax.f32 %v581, 0.0
    %v676 = vmax.f32 %v586, 0.0
    %v677 = vmax.f32 %v589, 0.0
    %v678 = vmax.f32 %v594, 0.0
    %v679 = vmax.f32 %v597, 0.0
    %v680 = vmax.f32 %v602, 0.0
    %v681 = vmax.f32 %v605, 0.0
    %v682 = vmax.f32 %v610, 0.0
    %v683 = vmax.f32 %v613, 0.0
    %v684 = vmax.f32 %v618, 0.0
    %v685 = vmax.f32 %v621, 0.0
    %v686 = vmax.f32 %v626, 0.0
    %v687 = vmax.f32 %v629, 0.0
    %v688 = vmax.f32 %v634, 0.0
    %v689 = vmax.f32 %v637, 0.0
    %v690 = vmax.f32 %v642, 0.0
    %v691 = vmax.f32 %v645, 0.0
    %v692 = vmax.f32 %v650, 0.0
    %v693 = vmax.f32 %v653, 0.0
    %v694 = vpack.c.bf16 %v657, %v656
    %v695 = vpack.c.bf16 %v659, %v658
    %v696 = vpack.c.bf16 %v661, %v660
    %v697 = vpack.c.bf16 %v663, %v662
    %v698 = vpack.c.bf16 %v665, %v664
    %v699 = vpack.c.bf16 %v667, %v666
    %v700 = vpack.c.bf16 %v669, %v668
    %v701 = vpack.c.bf16 %v671, %v670
    %v702 = vpack.c.bf16 %v673, %v672
    %v703 = vpack.c.bf16 %v675, %v674
    %v704 = vpack.c.bf16 %v677, %v676
    %v705 = vpack.c.bf16 %v679, %v678
    %v706 = vpack.c.bf16 %v681, %v680
    %v707 = vpack.c.bf16 %v683, %v682
    %v708 = vpack.c.bf16 %v685, %v684
    %v709 = vpack.c.bf16 %v687, %v686
    %v710 = vpack.c.bf16 %v689, %v688
    %v711 = vpack.c.bf16 %v691, %v690
    %v712 = vpack.c.bf16 %v693, %v692
    %v713 = vld [vmem:[%s5] sm:$0xf]
    %v714 = vld [vmem:[%s5 + $0x4] sm:$0xf]
    %v715 = vld [vmem:[%s5 + $0x8] sm:$0xf]
    %v716 = vld [vmem:[%s5 + $0xc] sm:$0xf]
    %v717 = vld [vmem:[%s5 + $0x10] sm:$0xf]
    %v718 = vld [vmem:[%s5 + $0x14] sm:$0xf]
    %v719 = vld [vmem:[%s5 + $0x18] sm:$0xf]
    %v720 = vld [vmem:[%s5 + $0x1c] sm:$0xf]
    %v721 = vld [vmem:[%s5 + $0x20] sm:$0xf]
    %v722 = vld [vmem:[%s5 + $0x24] sm:$0xf]
    %v723 = vld [vmem:[%s5 + $0x28] sm:$0xf]
    %v724 = vld [vmem:[%s5 + $0x2c] sm:$0xf]
    %v725 = vld [vmem:[%s5 + $0x30] sm:$0xf]
    %v726 = vld [vmem:[%s5 + $0x34] sm:$0xf]
    %v727 = vld [vmem:[%s5 + $0x38] sm:$0xf]
    %v728 = vld [vmem:[%s5 + $0x3c] sm:$0xf]
    %v729 = vld [vmem:[%s6] sm:$0x1]
    %v731 = vlaneseq
    %v732 = vshrl.u32 %v731, 7
    %v733 = vsub.s32 0, %v732
    %v734 = vrot.slane %v729, %v733
    %v752 = vunpack.c.l.b16 %v713
    %v753 = vunpack.c.l.b16 %v714
    %v754 = vunpack.c.l.b16 %v715
    %v755 = vunpack.c.l.b16 %v716
    %v756 = vunpack.c.l.b16 %v717
    %v757 = vunpack.c.l.b16 %v718
    %v758 = vunpack.c.l.b16 %v719
    %v759 = vunpack.c.l.b16 %v720
    %v760 = vunpack.c.l.b16 %v721
    %v761 = vunpack.c.l.b16 %v722
    %v762 = vunpack.c.l.b16 %v723
    %v763 = vunpack.c.l.b16 %v724
    %v764 = vunpack.c.l.b16 %v725
    %v765 = vunpack.c.l.b16 %v726
    %v766 = vunpack.c.l.b16 %v727
    %v767 = vunpack.c.l.b16 %v728
    %v768 = vpack.c.b16 %v753, %v752
    %v769 = vpack.c.b16 %v755, %v754
    %v770 = vpack.c.b16 %v757, %v756
    %v771 = vpack.c.b16 %v759, %v758
    %v772 = vpack.c.b16 %v761, %v760
    %v773 = vpack.c.b16 %v763, %v762
    %v774 = vpack.c.b16 %v765, %v764
    %v775 = vpack.c.b16 %v767, %v766
    %784 = vmatprep.subr.bf16.mxu0 0
    %785 = vmatpush1.bf16.msra.mxu0 %v768
    %786 = vmatprep.subr.bf16.mxu0 0
    %787 = vmatpush1.bf16.msra.mxu0 %v769
    %788 = vmatprep.subr.bf16.mxu0 0
    %789 = vmatpush1.bf16.msra.mxu0 %v770
    %790 = vmatprep.subr.bf16.mxu0 0
    %791 = vmatpush1.bf16.msra.mxu0 %v771
    %792 = vmatprep.subr.bf16.mxu0 0
    %793 = vmatpush1.bf16.msra.mxu0 %v772
    %794 = vmatprep.subr.bf16.mxu0 0
    %795 = vmatpush1.bf16.msra.mxu0 %v773
    %796 = vmatprep.subr.bf16.mxu0 0
    %797 = vmatpush1.bf16.msra.mxu0 %v774
    %798 = vmatprep.subr.bf16.mxu0 0
    %799 = vmatpush1.bf16.msra.mxu0 %v775
    %800 = vmatprep.subr.bf16.mxu0 0
    %801 = vmatpush1.bf16.msra.mxu0 0
    %802 = vmatprep.subr.bf16.mxu0 0
    %803 = vmatpush1.bf16.msra.mxu0 0
    %804 = vmatprep.subr.bf16.mxu0 0
    %805 = vmatpush1.bf16.msra.mxu0 0
    %806 = vmatprep.subr.bf16.mxu0 0
    %807 = vmatpush1.bf16.msra.mxu0 0
    %808 = vmatprep.subr.bf16.mxu0 0
    %809 = vmatpush1.bf16.msra.mxu0 0
    %810 = vmatprep.subr.bf16.mxu0 0
    %811 = vmatpush1.bf16.msra.mxu0 0
    %812 = vmatprep.subr.bf16.mxu0 0
    %813 = vmatpush1.bf16.msra.mxu0 0
    %814 = vmatprep.subr.bf16.mxu0 0
    %815 = vmatpush1.bf16.msra.mxu0 0
    %816 = vmatprep.mubr.bf16.mxu0 0
    %817 = vmatmul.mubr.bf16.gmra.mrb[0].mxu0 %v694
    %v818 = vpop.f32.mrb[0].mxu0
    %v819 = vadd.f32 %v734, %v818
    %v820 = vpop.f32.mrb[0].mxu0
    %v821 = vpop.f32.mrb[0].mxu0
    %v822 = vadd.f32 %v734, %v821
    %v823 = vpop.f32.mrb[0].mxu0
    %824 = vmatprep.mubr.bf16.mxu0 0
    %825 = vmatmul.mubr.bf16.gmra.mrb[0].mxu0 %v695
    %v826 = vpop.f32.mrb[0].mxu0
    %v827 = vadd.f32 %v734, %v826
    %v828 = vpop.f32.mrb[0].mxu0
    %v829 = vpop.f32.mrb[0].mxu0
    %v830 = vadd.f32 %v734, %v829
    %v831 = vpop.f32.mrb[0].mxu0
    %832 = vmatprep.mubr.bf16.mxu0 0
    %833 = vmatmul.mubr.bf16.gmra.mrb[0].mxu0 %v696
    %v834 = vpop.f32.mrb[0].mxu0
    %v835 = vadd.f32 %v734, %v834
    %v836 = vpop.f32.mrb[0].mxu0
    %v837 = vpop.f32.mrb[0].mxu0
    %v838 = vadd.f32 %v734, %v837
    %v839 = vpop.f32.mrb[0].mxu0
    %840 = vmatprep.mubr.bf16.mxu0 0
    %841 = vmatmul.mubr.bf16.gmra.mrb[0].mxu0 %v697
    %v842 = vpop.f32.mrb[0].mxu0
    %v843 = vadd.f32 %v734, %v842
    %v844 = vpop.f32.mrb[0].mxu0
    %v845 = vpop.f32.mrb[0].mxu0
    %v846 = vadd.f32 %v734, %v845
    %v847 = vpop.f32.mrb[0].mxu0
    %848 = vmatprep.mubr.bf16.mxu0 0
    %849 = vmatmul.mubr.bf16.gmra.mrb[0].mxu0 %v698
    %v850 = vpop.f32.mrb[0].mxu0
    %v851 = vadd.f32 %v734, %v850
    %v852 = vpop.f32.mrb[0].mxu0
    %v853 = vpop.f32.mrb[0].mxu0
    %v854 = vadd.f32 %v734, %v853
    %v855 = vpop.f32.mrb[0].mxu0
    %856 = vmatprep.mubr.bf16.mxu0 0
    %857 = vmatmul.mubr.bf16.gmra.mrb[0].mxu0 %v699
    %v858 = vpop.f32.mrb[0].mxu0
    %v859 = vadd.f32 %v734, %v858
    %v860 = vpop.f32.mrb[0].mxu0
    %v861 = vpop.f32.mrb[0].mxu0
    %v862 = vadd.f32 %v734, %v861
    %v863 = vpop.f32.mrb[0].mxu0
    %864 = vmatprep.mubr.bf16.mxu0 0
    %865 = vmatmul.mubr.bf16.gmra.mrb[0].mxu0 %v700
    %v866 = vpop.f32.mrb[0].mxu0
    %v867 = vadd.f32 %v734, %v866
    %v868 = vpop.f32.mrb[0].mxu0
    %v869 = vpop.f32.mrb[0].mxu0
    %v870 = vadd.f32 %v734, %v869
    %v871 = vpop.f32.mrb[0].mxu0
    %872 = vmatprep.mubr.bf16.mxu0 0
    %873 = vmatmul.mubr.bf16.gmra.mrb[0].mxu0 %v701
    %v874 = vpop.f32.mrb[0].mxu0
    %v875 = vadd.f32 %v734, %v874
    %v876 = vpop.f32.mrb[0].mxu0
    %v877 = vpop.f32.mrb[0].mxu0
    %v878 = vadd.f32 %v734, %v877
    %v879 = vpop.f32.mrb[0].mxu0
    %880 = vmatprep.mubr.bf16.mxu0 0
    %881 = vmatmul.mubr.bf16.gmra.mrb[0].mxu0 %v702
    %v882 = vpop.f32.mrb[0].mxu0
    %v883 = vadd.f32 %v734, %v882
    %v884 = vpop.f32.mrb[0].mxu0
    %v885 = vpop.f32.mrb[0].mxu0
    %v886 = vadd.f32 %v734, %v885
    %v887 = vpop.f32.mrb[0].mxu0
    %888 = vmatprep.mubr.bf16.mxu0 0
    %889 = vmatmul.mubr.bf16.gmra.mrb[0].mxu0 %v703
    %v890 = vpop.f32.mrb[0].mxu0
    %v891 = vadd.f32 %v734, %v890
    %v892 = vpop.f32.mrb[0].mxu0
    %v893 = vpop.f32.mrb[0].mxu0
    %v894 = vadd.f32 %v734, %v893
    %v895 = vpop.f32.mrb[0].mxu0
    %896 = vmatprep.mubr.bf16.mxu0 0
    %897 = vmatmul.mubr.bf16.gmra.mrb[0].mxu0 %v704
    %v898 = vpop.f32.mrb[0].mxu0
    %v899 = vadd.f32 %v734, %v898
    %v900 = vpop.f32.mrb[0].mxu0
    %v901 = vpop.f32.mrb[0].mxu0
    %v902 = vadd.f32 %v734, %v901
    %v903 = vpop.f32.mrb[0].mxu0
    %904 = vmatprep.mubr.bf16.mxu0 0
    %905 = vmatmul.mubr.bf16.gmra.mrb[0].mxu0 %v705
    %v906 = vpop.f32.mrb[0].mxu0
    %v907 = vadd.f32 %v734, %v906
    %v908 = vpop.f32.mrb[0].mxu0
    %v909 = vpop.f32.mrb[0].mxu0
    %v910 = vadd.f32 %v734, %v909
    %v911 = vpop.f32.mrb[0].mxu0
    %912 = vmatprep.mubr.bf16.mxu0 0
    %913 = vmatmul.mubr.bf16.gmra.mrb[0].mxu0 %v706
    %v914 = vpop.f32.mrb[0].mxu0
    %v915 = vadd.f32 %v734, %v914
    %v916 = vpop.f32.mrb[0].mxu0
    %v917 = vpop.f32.mrb[0].mxu0
    %v918 = vadd.f32 %v734, %v917
    %v919 = vpop.f32.mrb[0].mxu0
    %920 = vmatprep.mubr.bf16.mxu0 0
    %921 = vmatmul.mubr.bf16.gmra.mrb[0].mxu0 %v707
    %v922 = vpop.f32.mrb[0].mxu0
    %v923 = vadd.f32 %v734, %v922
    %v924 = vpop.f32.mrb[0].mxu0
    %v925 = vpop.f32.mrb[0].mxu0
    %v926 = vadd.f32 %v734, %v925
    %v927 = vpop.f32.mrb[0].mxu0
    %928 = vmatprep.mubr.bf16.mxu0 0
    %929 = vmatmul.mubr.bf16.gmra.mrb[0].mxu0 %v708
    %v930 = vpop.f32.mrb[0].mxu0
    %v931 = vadd.f32 %v734, %v930
    %v932 = vpop.f32.mrb[0].mxu0
    %v933 = vpop.f32.mrb[0].mxu0
    %v934 = vadd.f32 %v734, %v933
    %v935 = vpop.f32.mrb[0].mxu0
    %936 = vmatprep.mubr.bf16.mxu0 0
    %937 = vmatmul.mubr.bf16.gmra.mrb[0].mxu0 %v709
    %v938 = vpop.f32.mrb[0].mxu0
    %v939 = vadd.f32 %v734, %v938
    %v940 = vpop.f32.mrb[0].mxu0
    %v941 = vpop.f32.mrb[0].mxu0
    %v942 = vadd.f32 %v734, %v941
    %v943 = vpop.f32.mrb[0].mxu0
    %944 = vmatprep.mubr.bf16.mxu0 0
    %945 = vmatmul.mubr.bf16.gmra.mrb[0].mxu0 %v710
    %v946 = vpop.f32.mrb[0].mxu0
    %v947 = vadd.f32 %v734, %v946
    %v948 = vpop.f32.mrb[0].mxu0
    %v949 = vpop.f32.mrb[0].mxu0
    %v950 = vadd.f32 %v734, %v949
    %v951 = vpop.f32.mrb[0].mxu0
    %952 = vmatprep.mubr.bf16.mxu0 0
    %953 = vmatmul.mubr.bf16.gmra.mrb[0].mxu0 %v711
    %v954 = vpop.f32.mrb[0].mxu0
    %v955 = vadd.f32 %v734, %v954
    %v956 = vpop.f32.mrb[0].mxu0
    %v957 = vpop.f32.mrb[0].mxu0
    %v958 = vadd.f32 %v734, %v957
    %v959 = vpop.f32.mrb[0].mxu0
    %960 = vmatprep.mubr.bf16.mxu0 0
    %961 = vmatmul.mubr.bf16.gmra.mrb[0].mxu0 %v712
    %v962 = vpop.f32.mrb[0].mxu0
    %v963 = vadd.f32 %v734, %v962
    %v964 = vpop.f32.mrb[0].mxu0
    %v965 = vpop.f32.mrb[0].mxu0
    %v966 = vadd.f32 %v734, %v965
    %v967 = vpop.f32.mrb[0].mxu0
    %968 = vdwg.mxu0
    %969 = vst [vmem:[#allocation2] sm:$0xff] %v819
    %970 = vst [vmem:[#allocation2 + $0x8] sm:$0xff] %v822
    %971 = vst [vmem:[#allocation2 + $0x10] sm:$0xff] %v827
    %972 = vst [vmem:[#allocation2 + $0x18] sm:$0xff] %v830
    %973 = vst [vmem:[#allocation2 + $0x20] sm:$0xff] %v835
    %974 = vst [vmem:[#allocation2 + $0x28] sm:$0xff] %v838
    %975 = vst [vmem:[#allocation2 + $0x30] sm:$0xff] %v843
    %976 = vst [vmem:[#allocation2 + $0x38] sm:$0xff] %v846
    %977 = vst [vmem:[#allocation2 + $0x40] sm:$0xff] %v851
    %978 = vst [vmem:[#allocation2 + $0x48] sm:$0xff] %v854
    %979 = vst [vmem:[#allocation2 + $0x50] sm:$0xff] %v859
    %980 = vst [vmem:[#allocation2 + $0x58] sm:$0xff] %v862
    %981 = vst [vmem:[#allocation2 + $0x60] sm:$0xff] %v867
    %982 = vst [vmem:[#allocation2 + $0x68] sm:$0xff] %v870
    %983 = vst [vmem:[#allocation2 + $0x70] sm:$0xff] %v875
    %984 = vst [vmem:[#allocation2 + $0x78] sm:$0xff] %v878
    %985 = vst [vmem:[#allocation2 + $0x80] sm:$0xff] %v883
    %986 = vst [vmem:[#allocation2 + $0x88] sm:$0xff] %v886
    %987 = vst [vmem:[#allocation2 + $0x90] sm:$0xff] %v891
    %988 = vst [vmem:[#allocation2 + $0x98] sm:$0xff] %v894
    %989 = vst [vmem:[#allocation2 + $0xa0] sm:$0xff] %v899
    %990 = vst [vmem:[#allocation2 + $0xa8] sm:$0xff] %v902
    %991 = vst [vmem:[#allocation2 + $0xb0] sm:$0xff] %v907
    %992 = vst [vmem:[#allocation2 + $0xb8] sm:$0xff] %v910
    %993 = vst [vmem:[#allocation2 + $0xc0] sm:$0xff] %v915
    %994 = vst [vmem:[#allocation2 + $0xc8] sm:$0xff] %v918
    %995 = vst [vmem:[#allocation2 + $0xd0] sm:$0xff] %v923
    %996 = vst [vmem:[#allocation2 + $0xd8] sm:$0xff] %v926
    %997 = vst [vmem:[#allocation2 + $0xe0] sm:$0xff] %v931
    %998 = vst [vmem:[#allocation2 + $0xe8] sm:$0xff] %v934
    %999 = vst [vmem:[#allocation2 + $0xf0] sm:$0xff] %v939
    %1000 = vst [vmem:[#allocation2 + $0xf8] sm:$0xff] %v942
    %1001 = vst [vmem:[#allocation2 + $0x100] sm:$0xff] %v947
    %1002 = vst [vmem:[#allocation2 + $0x108] sm:$0xff] %v950
    %1003 = vst [vmem:[#allocation2 + $0x110] sm:$0xff] %v955
    %1004 = vst [vmem:[#allocation2 + $0x118] sm:$0xff] %v958
    %1005 = vst [vmem:[#allocation2 + $0x120] sm:$0xff] %v963
    %1006 = vst [vmem:[#allocation2 + $0x128] sm:$0xff] %v966
    // Predicated region
    $region30: #{tpu_custom_call.1} parent=1 // pred_check
      _
    $region31: #{tpu_custom_call.1} parent=1 // pred_check_branch
      %1008 = sbr.rel (0) target = $region33
    $region32: #{tpu_custom_call.1} parent=1 // pred_region
      %s1010 = ssub.s32 4864, 4864
      %1011 = vsyncadd [#allocation3], %s1010
      %s1012 = sshll.u32 [#allocation2], 4
      %s1013 = int_to_ptr.vmem [resolvable:$true] %s1012
      %1018 = dma.vmem_to_hbm [thread:$0]  %s1013, 4864, %s7, [#allocation3], 128, 128, 8
    $region33: #{tpu_custom_call.1} parent=1 // pred_fallthru
      _
    // Predicated region
    $region34: #{tpu_custom_call.1} parent=1 // pred_check
      _
    $region35: #{tpu_custom_call.1} parent=1 // pred_check_branch
      %1020 = sbr.rel (0) target = $region37
    $region36: #{tpu_custom_call.1} parent=1 // pred_region
      %1021 = dma.done [#allocation3], 4864
    $region37: #{tpu_custom_call.1} parent=1 // pred_fallthru
      _
    %1022 = vsyncpa [#allocation3], 1

// kernel: tpu_custom_call.1
$region0: #{tpu_custom_call.1}
  #allocation0 [shape = 'u32[]', space=smem, size = 0x4, offset = 0x4, fixed_abs, tag = 'smem constant byte address 0x4 - core index']
  #allocation1 [shape = 'u32[144,128]{1,0:T(1,128)}', space=vmem, size = 0x12000, scoped, tag = 'internal scratch']
  %s0 = inlined_call_operand.vmem [shape: f32[304,16], index: 0, kind: input, shape index: {}]
  %s1 = inlined_call_operand.vmem [shape: bf16[16,128], index: 1, kind: input, shape index: {}]
  %s2 = inlined_call_operand.vmem [shape: f32[1,128], index: 2, kind: input, shape index: {}]
  %s3 = inlined_call_operand.vmem [shape: bf16[128,128], index: 3, kind: input, shape index: {}]
  %s4 = inlined_call_operand.vmem [shape: f32[1,128], index: 4, kind: input, shape index: {}]
  %s5 = inlined_call_operand.vmem [shape: bf16[128,128], index: 5, kind: input, shape index: {}]
  %s6 = inlined_call_operand.vmem [shape: f32[1,128], index: 6, kind: input, shape index: {}]
  %s7 = inlined_call_operand.hbm [shape: f32[304,128], index: 7, kind: output, shape index: {}]
  %s8 = sld [smem:[#allocation0]]
  $region38: #{tpu_custom_call.1} parent=0
    _
  %s10 = ssub.s32 1, %s8
  %s11 = scalar_select 0, %s10, %s8
  $region1: #{tpu_custom_call.1} parent=0
    #allocation2 [shape = 'u8[155648]{0}', space=vmem, size = 0x26000, scoped, tag = 'output window, operand 0, single buffered']
    #allocation3 [shape = 's32[1]{0}', space=sflag, size = 0x4, scoped, tag = 'scoped memory for tpu_custom_call.1']
    %12 = vsyncpa [#allocation3], 0
    // Predicated region
    $region2: #{tpu_custom_call.1} parent=1 // pred_check
      _
    $region3: #{tpu_custom_call.1} parent=1 // pred_check_branch
      %14 = sbr.rel (0) target = $region5
    $region4: #{tpu_custom_call.1} parent=1 // pred_region
      _
    $region5: #{tpu_custom_call.1} parent=1 // pred_fallthru
      _
    // Predicated region
    $region6: #{tpu_custom_call.1} parent=1 // pred_check
      _
    $region7: #{tpu_custom_call.1} parent=1 // pred_check_branch
      %16 = sbr.rel (0) target = $region9
    $region8: #{tpu_custom_call.1} parent=1 // pred_region
      _
    $region9: #{tpu_custom_call.1} parent=1 // pred_fallthru
      _
    // Predicated region
    $region10: #{tpu_custom_call.1} parent=1 // pred_check
      _
    $region11: #{tpu_custom_call.1} parent=1 // pred_check_branch
      %18 = sbr.rel (0) target = $region13
    $region12: #{tpu_custom_call.1} parent=1 // pred_region
      _
    $region13: #{tpu_custom_call.1} parent=1 // pred_fallthru
      _
    // Predicated region
    $region14: #{tpu_custom_call.1} parent=1 // pred_check
      _
    $region15: #{tpu_custom_call.1} parent=1 // pred_check_branch
      %20 = sbr.rel (0) target = $region17
    $region16: #{tpu_custom_call.1} parent=1 // pred_region
      _
    $region17: #{tpu_custom_call.1} parent=1 // pred_fallthru
      _
    // Predicated region
    $region18: #{tpu_custom_call.1} parent=1 // pred_check
      _
    $region19: #{tpu_custom_call.1} parent=1 // pred_check_branch
      %22 = sbr.rel (0) target = $region21
    $region20: #{tpu_custom_call.1} parent=1 // pred_region
      _
    $region21: #{tpu_custom_call.1} parent=1 // pred_fallthru
      _
    // Predicated region
    $region22: #{tpu_custom_call.1} parent=1 // pred_check
      _
    $region23: #{tpu_custom_call.1} parent=1 // pred_check_branch
      %24 = sbr.rel (0) target = $region25
    $region24: #{tpu_custom_call.1} parent=1 // pred_region
      _
    $region25: #{tpu_custom_call.1} parent=1 // pred_fallthru
      _
    // Predicated region
    $region26: #{tpu_custom_call.1} parent=1 // pred_check
      _
    $region27: #{tpu_custom_call.1} parent=1 // pred_check_branch
      %26 = sbr.rel (0) target = $region29
    $region28: #{tpu_custom_call.1} parent=1 // pred_region
      _
    $region29: #{tpu_custom_call.1} parent=1 // pred_fallthru
      _
    %v28 = vld [vmem:[%s0] sm:$0xff]
    %v29 = vld [vmem:[%s0 + $0x8] sm:$0xff]
    %v30 = vld [vmem:[%s0 + $0x10] sm:$0xff]
    %v31 = vld [vmem:[%s0 + $0x18] sm:$0xff]
    %v32 = vld [vmem:[%s0 + $0x20] sm:$0xff]
    %v33 = vld [vmem:[%s0 + $0x28] sm:$0xff]
    %v34 = vld [vmem:[%s0 + $0x30] sm:$0xff]
    %v35 = vld [vmem:[%s0 + $0x38] sm:$0xff]
    %v36 = vld [vmem:[%s0 + $0x40] sm:$0xff]
    %v37 = vld [vmem:[%s0 + $0x48] sm:$0xff]
    %v38 = vld [vmem:[%s0 + $0x50] sm:$0xff]
    %v39 = vld [vmem:[%s0 + $0x58] sm:$0xff]
    %v40 = vld [vmem:[%s0 + $0x60] sm:$0xff]
    %v41 = vld [vmem:[%s0 + $0x68] sm:$0xff]
    %v42 = vld [vmem:[%s0 + $0x70] sm:$0xff]
    %v43 = vld [vmem:[%s0 + $0x78] sm:$0xff]
    %v44 = vld [vmem:[%s0 + $0x80] sm:$0xff]
    %v45 = vld [vmem:[%s0 + $0x88] sm:$0xff]
    %v46 = vld [vmem:[%s0 + $0x90] sm:$0xff]
    %v47 = vld [vmem:[%s0 + $0x98] sm:$0xff]
    %v48 = vld [vmem:[%s0 + $0xa0] sm:$0xff]
    %v49 = vld [vmem:[%s0 + $0xa8] sm:$0xff]
    %v50 = vld [vmem:[%s0 + $0xb0] sm:$0xff]
    %v51 = vld [vmem:[%s0 + $0xb8] sm:$0xff]
    %v52 = vld [vmem:[%s0 + $0xc0] sm:$0xff]
    %v53 = vld [vmem:[%s0 + $0xc8] sm:$0xff]
    %v54 = vld [vmem:[%s0 + $0xd0] sm:$0xff]
    %v55 = vld [vmem:[%s0 + $0xd8] sm:$0xff]
    %v56 = vld [vmem:[%s0 + $0xe0] sm:$0xff]
    %v57 = vld [vmem:[%s0 + $0xe8] sm:$0xff]
    %v58 = vld [vmem:[%s0 + $0xf0] sm:$0xff]
    %v59 = vld [vmem:[%s0 + $0xf8] sm:$0xff]
    %v60 = vld [vmem:[%s0 + $0x100] sm:$0xff]
    %v61 = vld [vmem:[%s0 + $0x108] sm:$0xff]
    %v62 = vld [vmem:[%s0 + $0x110] sm:$0xff]
    %v63 = vld [vmem:[%s0 + $0x118] sm:$0xff]
    %v64 = vld [vmem:[%s0 + $0x120] sm:$0xff]
    %v65 = vld [vmem:[%s0 + $0x128] sm:$0xff]
    %v66 = vpack.c.bf16 %v29, %v28
    %v67 = vpack.c.bf16 %v31, %v30
    %v68 = vpack.c.bf16 %v33, %v32
    %v69 = vpack.c.bf16 %v35, %v34
    %v70 = vpack.c.bf16 %v37, %v36
    %v71 = vpack.c.bf16 %v39, %v38
    %v72 = vpack.c.bf16 %v41, %v40
    %v73 = vpack.c.bf16 %v43, %v42
    %v74 = vpack.c.bf16 %v45, %v44
    %v75 = vpack.c.bf16 %v47, %v46
    %v76 = vpack.c.bf16 %v49, %v48
    %v77 = vpack.c.bf16 %v51, %v50
    %v78 = vpack.c.bf16 %v53, %v52
    %v79 = vpack.c.bf16 %v55, %v54
    %v80 = vpack.c.bf16 %v57, %v56
    %v81 = vpack.c.bf16 %v59, %v58
    %v82 = vpack.c.bf16 %v61, %v60
    %v83 = vpack.c.bf16 %v63, %v62
    %v84 = vpack.c.bf16 %v65, %v64
    %v85 = vld [vmem:[%s1] sm:$0xf]
    %v86 = vld [vmem:[%s1 + $0x4] sm:$0xf]
    %v87 = vld [vmem:[%s2] sm:$0x1]
    %v89 = vlaneseq
    %v90 = vshrl.u32 %v89, 7
    %v91 = vsub.s32 0, %v90
    %v92 = vrot.slane %v87, %v91
    %v96 = vunpack.c.l.b16 %v85
    %v97 = vunpack.c.l.b16 %v86
    %v98 = vpack.c.b16 %v97, %v96
    %vm100 = vcmask 130048
    %v102 = vsel %vm100, %v66, 0
    %v105 = vsel %vm100, %v67, 0
    %v108 = vsel %vm100, %v68, 0
    %v111 = vsel %vm100, %v69, 0
    %v114 = vsel %vm100, %v70, 0
    %v117 = vsel %vm100, %v71, 0
    %v120 = vsel %vm100, %v72, 0
    %v123 = vsel %vm100, %v73, 0
    %v126 = vsel %vm100, %v74, 0
    %v129 = vsel %vm100, %v75, 0
    %v132 = vsel %vm100, %v76, 0
    %v135 = vsel %vm100, %v77, 0
    %v138 = vsel %vm100, %v78, 0
    %v141 = vsel %vm100, %v79, 0
    %v144 = vsel %vm100, %v80, 0
    %v147 = vsel %vm100, %v81, 0
    %v150 = vsel %vm100, %v82, 0
    %v153 = vsel %vm100, %v83, 0
    %v156 = vsel %vm100, %v84, 0
    %158 = vmatprep.subr.bf16.mxu0 0
    %159 = vmatpush1.bf16.msra.mxu0 %v98
    %160 = vmatprep.subr.bf16.mxu0 0
    %161 = vmatpush1.bf16.msra.mxu0 0
    %162 = vmatprep.subr.bf16.mxu0 0
    %163 = vmatpush1.bf16.msra.mxu0 0
    %164 = vmatprep.subr.bf16.mxu0 0
    %165 = vmatpush1.bf16.msra.mxu0 0
    %166 = vmatprep.subr.bf16.mxu0 0
    %167 = vmatpush1.bf16.msra.mxu0 0
    %168 = vmatprep.subr.bf16.mxu0 0
    %169 = vmatpush1.bf16.msra.mxu0 0
    %170 = vmatprep.subr.bf16.mxu0 0
    %171 = vmatpush1.bf16.msra.mxu0 0
    %172 = vmatprep.subr.bf16.mxu0 0
    %173 = vmatpush1.bf16.msra.mxu0 0
    %174 = vmatprep.subr.bf16.mxu0 0
    %175 = vmatpush1.bf16.msra.mxu0 0
    %176 = vmatprep.subr.bf16.mxu0 0
    %177 = vmatpush1.bf16.msra.mxu0 0
    %178 = vmatprep.subr.bf16.mxu0 0
    %179 = vmatpush1.bf16.msra.mxu0 0
    %180 = vmatprep.subr.bf16.mxu0 0
    %181 = vmatpush1.bf16.msra.mxu0 0
    %182 = vmatprep.subr.bf16.mxu0 0
    %183 = vmatpush1.bf16.msra.mxu0 0
    %184 = vmatprep.subr.bf16.mxu0 0
    %185 = vmatpush1.bf16.msra.mxu0 0
    %186 = vmatprep.subr.bf16.mxu0 0
    %187 = vmatpush1.bf16.msra.mxu0 0
    %188 = vmatprep.subr.bf16.mxu0 0
    %189 = vmatpush1.bf16.msra.mxu0 0
    %190 = vmatprep.mubr.bf16.mxu0 0
    %191 = vmatmul.mubr.bf16.gmra.mrb[0].mxu0 %v102
    %v192 = vpop.f32.mrb[0].mxu0
    %v193 = vadd.f32 %v92, %v192
    %v194 = vpop.f32.mrb[0].mxu0
    %v195 = vpop.f32.mrb[0].mxu0
    %v196 = vadd.f32 %v92, %v195
    %v197 = vpop.f32.mrb[0].mxu0
    %198 = vmatprep.mubr.bf16.mxu0 0
    %199 = vmatmul.mubr.bf16.gmra.mrb[0].mxu0 %v105
    %v200 = vpop.f32.mrb[0].mxu0
    %v201 = vadd.f32 %v92, %v200
    %v202 = vpop.f32.mrb[0].mxu0
    %v203 = vpop.f32.mrb[0].mxu0
    %v204 = vadd.f32 %v92, %v203
    %v205 = vpop.f32.mrb[0].mxu0
    %206 = vmatprep.mubr.bf16.mxu0 0
    %207 = vmatmul.mubr.bf16.gmra.mrb[0].mxu0 %v108
    %v208 = vpop.f32.mrb[0].mxu0
    %v209 = vadd.f32 %v92, %v208
    %v210 = vpop.f32.mrb[0].mxu0
    %v211 = vpop.f32.mrb[0].mxu0
    %v212 = vadd.f32 %v92, %v211
    %v213 = vpop.f32.mrb[0].mxu0
    %214 = vmatprep.mubr.bf16.mxu0 0
    %215 = vmatmul.mubr.bf16.gmra.mrb[0].mxu0 %v111
    %v216 = vpop.f32.mrb[0].mxu0
    %v217 = vadd.f32 %v92, %v216
    %v218 = vpop.f32.mrb[0].mxu0
    %v219 = vpop.f32.mrb[0].mxu0
    %v220 = vadd.f32 %v92, %v219
    %v221 = vpop.f32.mrb[0].mxu0
    %222 = vmatprep.mubr.bf16.mxu0 0
    %223 = vmatmul.mubr.bf16.gmra.mrb[0].mxu0 %v114
    %v224 = vpop.f32.mrb[0].mxu0
    %v225 = vadd.f32 %v92, %v224
    %v226 = vpop.f32.mrb[0].mxu0
    %v227 = vpop.f32.mrb[0].mxu0
    %v228 = vadd.f32 %v92, %v227
    %v229 = vpop.f32.mrb[0].mxu0
    %230 = vmatprep.mubr.bf16.mxu0 0
    %231 = vmatmul.mubr.bf16.gmra.mrb[0].mxu0 %v117
    %v232 = vpop.f32.mrb[0].mxu0
    %v233 = vadd.f32 %v92, %v232
    %v234 = vpop.f32.mrb[0].mxu0
    %v235 = vpop.f32.mrb[0].mxu0
    %v236 = vadd.f32 %v92, %v235
    %v237 = vpop.f32.mrb[0].mxu0
    %238 = vmatprep.mubr.bf16.mxu0 0
    %239 = vmatmul.mubr.bf16.gmra.mrb[0].mxu0 %v120
    %v240 = vpop.f32.mrb[0].mxu0
    %v241 = vadd.f32 %v92, %v240
    %v242 = vpop.f32.mrb[0].mxu0
    %v243 = vpop.f32.mrb[0].mxu0
    %v244 = vadd.f32 %v92, %v243
    %v245 = vpop.f32.mrb[0].mxu0
    %246 = vmatprep.mubr.bf16.mxu0 0
    %247 = vmatmul.mubr.bf16.gmra.mrb[0].mxu0 %v123
    %v248 = vpop.f32.mrb[0].mxu0
    %v249 = vadd.f32 %v92, %v248
    %v250 = vpop.f32.mrb[0].mxu0
    %v251 = vpop.f32.mrb[0].mxu0
    %v252 = vadd.f32 %v92, %v251
    %v253 = vpop.f32.mrb[0].mxu0
    %254 = vmatprep.mubr.bf16.mxu0 0
    %255 = vmatmul.mubr.bf16.gmra.mrb[0].mxu0 %v126
    %v256 = vpop.f32.mrb[0].mxu0
    %v257 = vadd.f32 %v92, %v256
    %v258 = vpop.f32.mrb[0].mxu0
    %v259 = vpop.f32.mrb[0].mxu0
    %v260 = vadd.f32 %v92, %v259
    %v261 = vpop.f32.mrb[0].mxu0
    %262 = vmatprep.mubr.bf16.mxu0 0
    %263 = vmatmul.mubr.bf16.gmra.mrb[0].mxu0 %v129
    %v264 = vpop.f32.mrb[0].mxu0
    %v265 = vadd.f32 %v92, %v264
    %v266 = vpop.f32.mrb[0].mxu0
    %v267 = vpop.f32.mrb[0].mxu0
    %v268 = vadd.f32 %v92, %v267
    %v269 = vpop.f32.mrb[0].mxu0
    %270 = vmatprep.mubr.bf16.mxu0 0
    %271 = vmatmul.mubr.bf16.gmra.mrb[0].mxu0 %v132
    %v272 = vpop.f32.mrb[0].mxu0
    %v273 = vadd.f32 %v92, %v272
    %v274 = vpop.f32.mrb[0].mxu0
    %v275 = vpop.f32.mrb[0].mxu0
    %v276 = vadd.f32 %v92, %v275
    %v277 = vpop.f32.mrb[0].mxu0
    %278 = vmatprep.mubr.bf16.mxu0 0
    %279 = vmatmul.mubr.bf16.gmra.mrb[0].mxu0 %v135
    %v280 = vpop.f32.mrb[0].mxu0
    %v281 = vadd.f32 %v92, %v280
    %v282 = vpop.f32.mrb[0].mxu0
    %v283 = vpop.f32.mrb[0].mxu0
    %v284 = vadd.f32 %v92, %v283
    %v285 = vpop.f32.mrb[0].mxu0
    %286 = vmatprep.mubr.bf16.mxu0 0
    %287 = vmatmul.mubr.bf16.gmra.mrb[0].mxu0 %v138
    %v288 = vpop.f32.mrb[0].mxu0
    %v289 = vadd.f32 %v92, %v288
    %v290 = vpop.f32.mrb[0].mxu0
    %v291 = vpop.f32.mrb[0].mxu0
    %v292 = vadd.f32 %v92, %v291
    %v293 = vpop.f32.mrb[0].mxu0
    %294 = vmatprep.mubr.bf16.mxu0 0
    %295 = vmatmul.mubr.bf16.gmra.mrb[0].mxu0 %v141
    %v296 = vpop.f32.mrb[0].mxu0
    %v297 = vadd.f32 %v92, %v296
    %v298 = vpop.f32.mrb[0].mxu0
    %v299 = vpop.f32.mrb[0].mxu0
    %v300 = vadd.f32 %v92, %v299
    %v301 = vpop.f32.mrb[0].mxu0
    %302 = vmatprep.mubr.bf16.mxu0 0
    %303 = vmatmul.mubr.bf16.gmra.mrb[0].mxu0 %v144
    %v304 = vpop.f32.mrb[0].mxu0
    %v305 = vadd.f32 %v92, %v304
    %v306 = vpop.f32.mrb[0].mxu0
    %v307 = vpop.f32.mrb[0].mxu0
    %v308 = vadd.f32 %v92, %v307
    %v309 = vpop.f32.mrb[0].mxu0
    %310 = vmatprep.mubr.bf16.mxu0 0
    %311 = vmatmul.mubr.bf16.gmra.mrb[0].mxu0 %v147
    %v312 = vpop.f32.mrb[0].mxu0
    %v313 = vadd.f32 %v92, %v312
    %v314 = vpop.f32.mrb[0].mxu0
    %v315 = vpop.f32.mrb[0].mxu0
    %v316 = vadd.f32 %v92, %v315
    %v317 = vpop.f32.mrb[0].mxu0
    %318 = vmatprep.mubr.bf16.mxu0 0
    %319 = vmatmul.mubr.bf16.gmra.mrb[0].mxu0 %v150
    %v320 = vpop.f32.mrb[0].mxu0
    %v321 = vadd.f32 %v92, %v320
    %v322 = vpop.f32.mrb[0].mxu0
    %v323 = vpop.f32.mrb[0].mxu0
    %v324 = vadd.f32 %v92, %v323
    %v325 = vpop.f32.mrb[0].mxu0
    %326 = vmatprep.mubr.bf16.mxu0 0
    %327 = vmatmul.mubr.bf16.gmra.mrb[0].mxu0 %v153
    %v328 = vpop.f32.mrb[0].mxu0
    %v329 = vadd.f32 %v92, %v328
    %v330 = vpop.f32.mrb[0].mxu0
    %v331 = vpop.f32.mrb[0].mxu0
    %v332 = vadd.f32 %v92, %v331
    %v333 = vpop.f32.mrb[0].mxu0
    %334 = vmatprep.mubr.bf16.mxu0 0
    %335 = vmatmul.mubr.bf16.gmra.mrb[0].mxu0 %v156
    %v336 = vpop.f32.mrb[0].mxu0
    %v337 = vadd.f32 %v92, %v336
    %v338 = vpop.f32.mrb[0].mxu0
    %v339 = vpop.f32.mrb[0].mxu0
    %v340 = vadd.f32 %v92, %v339
    %v341 = vpop.f32.mrb[0].mxu0
    %342 = vdwg.mxu0
    %v343 = vmax.f32 %v193, 0.0
    %v344 = vmax.f32 %v196, 0.0
    %v345 = vmax.f32 %v201, 0.0
    %v346 = vmax.f32 %v204, 0.0
    %v347 = vmax.f32 %v209, 0.0
    %v348 = vmax.f32 %v212, 0.0
    %v349 = vmax.f32 %v217, 0.0
    %v350 = vmax.f32 %v220, 0.0
    %v351 = vmax.f32 %v225, 0.0
    %v352 = vmax.f32 %v228, 0.0
    %v353 = vmax.f32 %v233, 0.0
    %v354 = vmax.f32 %v236, 0.0
    %v355 = vmax.f32 %v241, 0.0
    %v356 = vmax.f32 %v244, 0.0
    %v357 = vmax.f32 %v249, 0.0
    %v358 = vmax.f32 %v252, 0.0
    %v359 = vmax.f32 %v257, 0.0
    %v360 = vmax.f32 %v260, 0.0
    %v361 = vmax.f32 %v265, 0.0
    %v362 = vmax.f32 %v268, 0.0
    %v363 = vmax.f32 %v273, 0.0
    %v364 = vmax.f32 %v276, 0.0
    %v365 = vmax.f32 %v281, 0.0
    %v366 = vmax.f32 %v284, 0.0
    %v367 = vmax.f32 %v289, 0.0
    %v368 = vmax.f32 %v292, 0.0
    %v369 = vmax.f32 %v297, 0.0
    %v370 = vmax.f32 %v300, 0.0
    %v371 = vmax.f32 %v305, 0.0
    %v372 = vmax.f32 %v308, 0.0
    %v373 = vmax.f32 %v313, 0.0
    %v374 = vmax.f32 %v316, 0.0
    %v375 = vmax.f32 %v321, 0.0
    %v376 = vmax.f32 %v324, 0.0
    %v377 = vmax.f32 %v329, 0.0
    %v378 = vmax.f32 %v332, 0.0
    %v379 = vmax.f32 %v337, 0.0
    %v380 = vmax.f32 %v340, 0.0
    %v381 = vpack.c.bf16 %v344, %v343
    %v382 = vpack.c.bf16 %v346, %v345
    %v383 = vpack.c.bf16 %v348, %v347
    %v384 = vpack.c.bf16 %v350, %v349
    %v385 = vpack.c.bf16 %v352, %v351
    %v386 = vpack.c.bf16 %v354, %v353
    %v387 = vpack.c.bf16 %v356, %v355
    %v388 = vpack.c.bf16 %v358, %v357
    %v389 = vpack.c.bf16 %v360, %v359
    %v390 = vpack.c.bf16 %v362, %v361
    %v391 = vpack.c.bf16 %v364, %v363
    %v392 = vpack.c.bf16 %v366, %v365
    %v393 = vpack.c.bf16 %v368, %v367
    %v394 = vpack.c.bf16 %v370, %v369
    %v395 = vpack.c.bf16 %v372, %v371
    %v396 = vpack.c.bf16 %v374, %v373
    %v397 = vpack.c.bf16 %v376, %v375
    %v398 = vpack.c.bf16 %v378, %v377
    %v399 = vpack.c.bf16 %v380, %v379
    %v400 = vld [vmem:[%s3] sm:$0xf]
    %v401 = vld [vmem:[%s3 + $0x4] sm:$0xf]
    %v402 = vld [vmem:[%s3 + $0x8] sm:$0xf]
    %v403 = vld [vmem:[%s3 + $0xc] sm:$0xf]
    %v404 = vld [vmem:[%s3 + $0x10] sm:$0xf]
    %v405 = vld [vmem:[%s3 + $0x14] sm:$0xf]
    %v406 = vld [vmem:[%s3 + $0x18] sm:$0xf]
    %v407 = vld [vmem:[%s3 + $0x1c] sm:$0xf]
    %v408 = vld [vmem:[%s3 + $0x20] sm:$0xf]
    %v409 = vld [vmem:[%s3 + $0x24] sm:$0xf]
    %v410 = vld [vmem:[%s3 + $0x28] sm:$0xf]
    %v411 = vld [vmem:[%s3 + $0x2c] sm:$0xf]
    %v412 = vld [vmem:[%s3 + $0x30] sm:$0xf]
    %v413 = vld [vmem:[%s3 + $0x34] sm:$0xf]
    %v414 = vld [vmem:[%s3 + $0x38] sm:$0xf]
    %v415 = vld [vmem:[%s3 + $0x3c] sm:$0xf]
    %v416 = vld [vmem:[%s4] sm:$0x1]
    %v418 = vlaneseq
    %v419 = vshrl.u32 %v418, 7
    %v420 = vsub.s32 0, %v419
    %v421 = vrot.slane %v416, %v420
    %v439 = vunpack.c.l.b16 %v400
    %v440 = vunpack.c.l.b16 %v401
    %v441 = vunpack.c.l.b16 %v402
    %v442 = vunpack.c.l.b16 %v403
    %v443 = vunpack.c.l.b16 %v404
    %v444 = vunpack.c.l.b16 %v405
    %v445 = vunpack.c.l.b16 %v406
    %v446 = vunpack.c.l.b16 %v407
    %v447 = vunpack.c.l.b16 %v408
    %v448 = vunpack.c.l.b16 %v409
    %v449 = vunpack.c.l.b16 %v410
    %v450 = vunpack.c.l.b16 %v411
    %v451 = vunpack.c.l.b16 %v412
    %v452 = vunpack.c.l.b16 %v413
    %v453 = vunpack.c.l.b16 %v414
    %v454 = vunpack.c.l.b16 %v415
    %v455 = vpack.c.b16 %v440, %v439
    %v456 = vpack.c.b16 %v442, %v441
    %v457 = vpack.c.b16 %v444, %v443
    %v458 = vpack.c.b16 %v446, %v445
    %v459 = vpack.c.b16 %v448, %v447
    %v460 = vpack.c.b16 %v450, %v449
    %v461 = vpack.c.b16 %v452, %v451
    %v462 = vpack.c.b16 %v454, %v453
    %471 = vmatprep.subr.bf16.mxu0 0
    %472 = vmatpush1.bf16.msra.mxu0 %v455
    %473 = vmatprep.subr.bf16.mxu0 0
    %474 = vmatpush1.bf16.msra.mxu0 %v456
    %475 = vmatprep.subr.bf16.mxu0 0
    %476 = vmatpush1.bf16.msra.mxu0 %v457
    %477 = vmatprep.subr.bf16.mxu0 0
    %478 = vmatpush1.bf16.msra.mxu0 %v458
    %479 = vmatprep.subr.bf16.mxu0 0
    %480 = vmatpush1.bf16.msra.mxu0 %v459
    %481 = vmatprep.subr.bf16.mxu0 0
    %482 = vmatpush1.bf16.msra.mxu0 %v460
    %483 = vmatprep.subr.bf16.mxu0 0
    %484 = vmatpush1.bf16.msra.mxu0 %v461
    %485 = vmatprep.subr.bf16.mxu0 0
    %486 = vmatpush1.bf16.msra.mxu0 %v462
    %487 = vmatprep.subr.bf16.mxu0 0
    %488 = vmatpush1.bf16.msra.mxu0 0
    %489 = vmatprep.subr.bf16.mxu0 0
    %490 = vmatpush1.bf16.msra.mxu0 0
    %491 = vmatprep.subr.bf16.mxu0 0
    %492 = vmatpush1.bf16.msra.mxu0 0
    %493 = vmatprep.subr.bf16.mxu0 0
    %494 = vmatpush1.bf16.msra.mxu0 0
    %495 = vmatprep.subr.bf16.mxu0 0
    %496 = vmatpush1.bf16.msra.mxu0 0
    %497 = vmatprep.subr.bf16.mxu0 0
    %498 = vmatpush1.bf16.msra.mxu0 0
    %499 = vmatprep.subr.bf16.mxu0 0
    %500 = vmatpush1.bf16.msra.mxu0 0
    %501 = vmatprep.subr.bf16.mxu0 0
    %502 = vmatpush1.bf16.msra.mxu0 0
    %503 = vmatprep.mubr.bf16.mxu0 0
    %504 = vmatmul.mubr.bf16.gmra.mrb[0].mxu0 %v381
    %v505 = vpop.f32.mrb[0].mxu0
    %v506 = vadd.f32 %v421, %v505
    %v507 = vpop.f32.mrb[0].mxu0
    %v508 = vpop.f32.mrb[0].mxu0
    %v509 = vadd.f32 %v421, %v508
    %v510 = vpop.f32.mrb[0].mxu0
    %511 = vmatprep.mubr.bf16.mxu0 0
    %512 = vmatmul.mubr.bf16.gmra.mrb[0].mxu0 %v382
    %v513 = vpop.f32.mrb[0].mxu0
    %v514 = vadd.f32 %v421, %v513
    %v515 = vpop.f32.mrb[0].mxu0
    %v516 = vpop.f32.mrb[0].mxu0
    %v517 = vadd.f32 %v421, %v516
    %v518 = vpop.f32.mrb[0].mxu0
    %519 = vmatprep.mubr.bf16.mxu0 0
    %520 = vmatmul.mubr.bf16.gmra.mrb[0].mxu0 %v383
    %v521 = vpop.f32.mrb[0].mxu0
    %v522 = vadd.f32 %v421, %v521
    %v523 = vpop.f32.mrb[0].mxu0
    %v524 = vpop.f32.mrb[0].mxu0
    %v525 = vadd.f32 %v421, %v524
    %v526 = vpop.f32.mrb[0].mxu0
    %527 = vmatprep.mubr.bf16.mxu0 0
    %528 = vmatmul.mubr.bf16.gmra.mrb[0].mxu0 %v384
    %v529 = vpop.f32.mrb[0].mxu0
    %v530 = vadd.f32 %v421, %v529
    %v531 = vpop.f32.mrb[0].mxu0
    %v532 = vpop.f32.mrb[0].mxu0
    %v533 = vadd.f32 %v421, %v532
    %v534 = vpop.f32.mrb[0].mxu0
    %535 = vmatprep.mubr.bf16.mxu0 0
    %536 = vmatmul.mubr.bf16.gmra.mrb[0].mxu0 %v385
    %v537 = vpop.f32.mrb[0].mxu0
    %v538 = vadd.f32 %v421, %v537
    %v539 = vpop.f32.mrb[0].mxu0
    %v540 = vpop.f32.mrb[0].mxu0
    %v541 = vadd.f32 %v421, %v540
    %v542 = vpop.f32.mrb[0].mxu0
    %543 = vmatprep.mubr.bf16.mxu0 0
    %544 = vmatmul.mubr.bf16.gmra.mrb[0].mxu0 %v386
    %v545 = vpop.f32.mrb[0].mxu0
    %v546 = vadd.f32 %v421, %v545
    %v547 = vpop.f32.mrb[0].mxu0
    %v548 = vpop.f32.mrb[0].mxu0
    %v549 = vadd.f32 %v421, %v548
    %v550 = vpop.f32.mrb[0].mxu0
    %551 = vmatprep.mubr.bf16.mxu0 0
    %552 = vmatmul.mubr.bf16.gmra.mrb[0].mxu0 %v387
    %v553 = vpop.f32.mrb[0].mxu0
    %v554 = vadd.f32 %v421, %v553
    %v555 = vpop.f32.mrb[0].mxu0
    %v556 = vpop.f32.mrb[0].mxu0
    %v557 = vadd.f32 %v421, %v556
    %v558 = vpop.f32.mrb[0].mxu0
    %559 = vmatprep.mubr.bf16.mxu0 0
    %560 = vmatmul.mubr.bf16.gmra.mrb[0].mxu0 %v388
    %v561 = vpop.f32.mrb[0].mxu0
    %v562 = vadd.f32 %v421, %v561
    %v563 = vpop.f32.mrb[0].mxu0
    %v564 = vpop.f32.mrb[0].mxu0
    %v565 = vadd.f32 %v421, %v564
    %v566 = vpop.f32.mrb[0].mxu0
    %567 = vmatprep.mubr.bf16.mxu0 0
    %568 = vmatmul.mubr.bf16.gmra.mrb[0].mxu0 %v389
    %v569 = vpop.f32.mrb[0].mxu0
    %v570 = vadd.f32 %v421, %v569
    %v571 = vpop.f32.mrb[0].mxu0
    %v572 = vpop.f32.mrb[0].mxu0
    %v573 = vadd.f32 %v421, %v572
    %v574 = vpop.f32.mrb[0].mxu0
    %575 = vmatprep.mubr.bf16.mxu0 0
    %576 = vmatmul.mubr.bf16.gmra.mrb[0].mxu0 %v390
    %v577 = vpop.f32.mrb[0].mxu0
    %v578 = vadd.f32 %v421, %v577
    %v579 = vpop.f32.mrb[0].mxu0
    %v580 = vpop.f32.mrb[0].mxu0
    %v581 = vadd.f32 %v421, %v580
    %v582 = vpop.f32.mrb[0].mxu0
    %583 = vmatprep.mubr.bf16.mxu0 0
    %584 = vmatmul.mubr.bf16.gmra.mrb[0].mxu0 %v391
    %v585 = vpop.f32.mrb[0].mxu0
    %v586 = vadd.f32 %v421, %v585
    %v587 = vpop.f32.mrb[0].mxu0
    %v588 = vpop.f32.mrb[0].mxu0
    %v589 = vadd.f32 %v421, %v588
    %v590 = vpop.f32.mrb[0].mxu0
    %591 = vmatprep.mubr.bf16.mxu0 0
    %592 = vmatmul.mubr.bf16.gmra.mrb[0].mxu0 %v392
    %v593 = vpop.f32.mrb[0].mxu0
    %v594 = vadd.f32 %v421, %v593
    %v595 = vpop.f32.mrb[0].mxu0
    %v596 = vpop.f32.mrb[0].mxu0
    %v597 = vadd.f32 %v421, %v596
    %v598 = vpop.f32.mrb[0].mxu0
    %599 = vmatprep.mubr.bf16.mxu0 0
    %600 = vmatmul.mubr.bf16.gmra.mrb[0].mxu0 %v393
    %v601 = vpop.f32.mrb[0].mxu0
    %v602 = vadd.f32 %v421, %v601
    %v603 = vpop.f32.mrb[0].mxu0
    %v604 = vpop.f32.mrb[0].mxu0
    %v605 = vadd.f32 %v421, %v604
    %v606 = vpop.f32.mrb[0].mxu0
    %607 = vmatprep.mubr.bf16.mxu0 0
    %608 = vmatmul.mubr.bf16.gmra.mrb[0].mxu0 %v394
    %v609 = vpop.f32.mrb[0].mxu0
    %v610 = vadd.f32 %v421, %v609
    %v611 = vpop.f32.mrb[0].mxu0
    %v612 = vpop.f32.mrb[0].mxu0
    %v613 = vadd.f32 %v421, %v612
    %v614 = vpop.f32.mrb[0].mxu0
    %615 = vmatprep.mubr.bf16.mxu0 0
    %616 = vmatmul.mubr.bf16.gmra.mrb[0].mxu0 %v395
    %v617 = vpop.f32.mrb[0].mxu0
    %v618 = vadd.f32 %v421, %v617
    %v619 = vpop.f32.mrb[0].mxu0
    %v620 = vpop.f32.mrb[0].mxu0
    %v621 = vadd.f32 %v421, %v620
    %v622 = vpop.f32.mrb[0].mxu0
    %623 = vmatprep.mubr.bf16.mxu0 0
    %624 = vmatmul.mubr.bf16.gmra.mrb[0].mxu0 %v396
    %v625 = vpop.f32.mrb[0].mxu0
    %v626 = vadd.f32 %v421, %v625
    %v627 = vpop.f32.mrb[0].mxu0
    %v628 = vpop.f32.mrb[0].mxu0
    %v629 = vadd.f32 %v421, %v628
    %v630 = vpop.f32.mrb[0].mxu0
    %631 = vmatprep.mubr.bf16.mxu0 0
    %632 = vmatmul.mubr.bf16.gmra.mrb[0].mxu0 %v397
    %v633 = vpop.f32.mrb[0].mxu0
    %v634 = vadd.f32 %v421, %v633
    %v635 = vpop.f32.mrb[0].mxu0
    %v636 = vpop.f32.mrb[0].mxu0
    %v637 = vadd.f32 %v421, %v636
    %v638 = vpop.f32.mrb[0].mxu0
    %639 = vmatprep.mubr.bf16.mxu0 0
    %640 = vmatmul.mubr.bf16.gmra.mrb[0].mxu0 %v398
    %v641 = vpop.f32.mrb[0].mxu0
    %v642 = vadd.f32 %v421, %v641
    %v643 = vpop.f32.mrb[0].mxu0
    %v644 = vpop.f32.mrb[0].mxu0
    %v645 = vadd.f32 %v421, %v644
    %v646 = vpop.f32.mrb[0].mxu0
    %647 = vmatprep.mubr.bf16.mxu0 0
    %648 = vmatmul.mubr.bf16.gmra.mrb[0].mxu0 %v399
    %v649 = vpop.f32.mrb[0].mxu0
    %v650 = vadd.f32 %v421, %v649
    %v651 = vpop.f32.mrb[0].mxu0
    %v652 = vpop.f32.mrb[0].mxu0
    %v653 = vadd.f32 %v421, %v652
    %v654 = vpop.f32.mrb[0].mxu0
    %655 = vdwg.mxu0
    %v656 = vmax.f32 %v506, 0.0
    %v657 = vmax.f32 %v509, 0.0
    %v658 = vmax.f32 %v514, 0.0
    %v659 = vmax.f32 %v517, 0.0
    %v660 = vmax.f32 %v522, 0.0
    %v661 = vmax.f32 %v525, 0.0
    %v662 = vmax.f32 %v530, 0.0
    %v663 = vmax.f32 %v533, 0.0
    %v664 = vmax.f32 %v538, 0.0
    %v665 = vmax.f32 %v541, 0.0
    %v666 = vmax.f32 %v546, 0.0
    %v667 = vmax.f32 %v549, 0.0
    %v668 = vmax.f32 %v554, 0.0
    %v669 = vmax.f32 %v557, 0.0
    %v670 = vmax.f32 %v562, 0.0
    %v671 = vmax.f32 %v565, 0.0
    %v672 = vmax.f32 %v570, 0.0
    %v673 = vmax.f32 %v573, 0.0
    %v674 = vmax.f32 %v578, 0.0
    %v675 = vmax.f32 %v581, 0.0
    %v676 = vmax.f32 %v586, 0.0
    %v677 = vmax.f32 %v589, 0.0
    %v678 = vmax.f32 %v594, 0.0
    %v679 = vmax.f32 %v597, 0.0
    %v680 = vmax.f32 %v602, 0.0
    %v681 = vmax.f32 %v605, 0.0
    %v682 = vmax.f32 %v610, 0.0
    %v683 = vmax.f32 %v613, 0.0
    %v684 = vmax.f32 %v618, 0.0
    %v685 = vmax.f32 %v621, 0.0
    %v686 = vmax.f32 %v626, 0.0
    %v687 = vmax.f32 %v629, 0.0
    %v688 = vmax.f32 %v634, 0.0
    %v689 = vmax.f32 %v637, 0.0
    %v690 = vmax.f32 %v642, 0.0
    %v691 = vmax.f32 %v645, 0.0
    %v692 = vmax.f32 %v650, 0.0
    %v693 = vmax.f32 %v653, 0.0
    %v694 = vpack.c.bf16 %v657, %v656
    %v695 = vpack.c.bf16 %v659, %v658
    %v696 = vpack.c.bf16 %v661, %v660
    %v697 = vpack.c.bf16 %v663, %v662
    %v698 = vpack.c.bf16 %v665, %v664
    %v699 = vpack.c.bf16 %v667, %v666
    %v700 = vpack.c.bf16 %v669, %v668
    %v701 = vpack.c.bf16 %v671, %v670
    %v702 = vpack.c.bf16 %v673, %v672
    %v703 = vpack.c.bf16 %v675, %v674
    %v704 = vpack.c.bf16 %v677, %v676
    %v705 = vpack.c.bf16 %v679, %v678
    %v706 = vpack.c.bf16 %v681, %v680
    %v707 = vpack.c.bf16 %v683, %v682
    %v708 = vpack.c.bf16 %v685, %v684
    %v709 = vpack.c.bf16 %v687, %v686
    %v710 = vpack.c.bf16 %v689, %v688
    %v711 = vpack.c.bf16 %v691, %v690
    %v712 = vpack.c.bf16 %v693, %v692
    %v713 = vld [vmem:[%s5] sm:$0xf]
    %v714 = vld [vmem:[%s5 + $0x4] sm:$0xf]
    %v715 = vld [vmem:[%s5 + $0x8] sm:$0xf]
    %v716 = vld [vmem:[%s5 + $0xc] sm:$0xf]
    %v717 = vld [vmem:[%s5 + $0x10] sm:$0xf]
    %v718 = vld [vmem:[%s5 + $0x14] sm:$0xf]
    %v719 = vld [vmem:[%s5 + $0x18] sm:$0xf]
    %v720 = vld [vmem:[%s5 + $0x1c] sm:$0xf]
    %v721 = vld [vmem:[%s5 + $0x20] sm:$0xf]
    %v722 = vld [vmem:[%s5 + $0x24] sm:$0xf]
    %v723 = vld [vmem:[%s5 + $0x28] sm:$0xf]
    %v724 = vld [vmem:[%s5 + $0x2c] sm:$0xf]
    %v725 = vld [vmem:[%s5 + $0x30] sm:$0xf]
    %v726 = vld [vmem:[%s5 + $0x34] sm:$0xf]
    %v727 = vld [vmem:[%s5 + $0x38] sm:$0xf]
    %v728 = vld [vmem:[%s5 + $0x3c] sm:$0xf]
    %v729 = vld [vmem:[%s6] sm:$0x1]
    %v731 = vlaneseq
    %v732 = vshrl.u32 %v731, 7
    %v733 = vsub.s32 0, %v732
    %v734 = vrot.slane %v729, %v733
    %v752 = vunpack.c.l.b16 %v713
    %v753 = vunpack.c.l.b16 %v714
    %v754 = vunpack.c.l.b16 %v715
    %v755 = vunpack.c.l.b16 %v716
    %v756 = vunpack.c.l.b16 %v717
    %v757 = vunpack.c.l.b16 %v718
    %v758 = vunpack.c.l.b16 %v719
    %v759 = vunpack.c.l.b16 %v720
    %v760 = vunpack.c.l.b16 %v721
    %v761 = vunpack.c.l.b16 %v722
    %v762 = vunpack.c.l.b16 %v723
    %v763 = vunpack.c.l.b16 %v724
    %v764 = vunpack.c.l.b16 %v725
    %v765 = vunpack.c.l.b16 %v726
    %v766 = vunpack.c.l.b16 %v727
    %v767 = vunpack.c.l.b16 %v728
    %v768 = vpack.c.b16 %v753, %v752
    %v769 = vpack.c.b16 %v755, %v754
    %v770 = vpack.c.b16 %v757, %v756
    %v771 = vpack.c.b16 %v759, %v758
    %v772 = vpack.c.b16 %v761, %v760
    %v773 = vpack.c.b16 %v763, %v762
    %v774 = vpack.c.b16 %v765, %v764
    %v775 = vpack.c.b16 %v767, %v766
    %784 = vmatprep.subr.bf16.mxu0 0
    %785 = vmatpush1.bf16.msra.mxu0 %v768
    %786 = vmatprep.subr.bf16.mxu0 0
    %787 = vmatpush1.bf16.msra.mxu0 %v769
    %788 = vmatprep.subr.bf16.mxu0 0
    %789 = vmatpush1.bf16.msra.mxu0 %v770
    %790 = vmatprep.subr.bf16.mxu0 0
    %791 = vmatpush1.bf16.msra.mxu0 %v771
    %792 = vmatprep.subr.bf16.mxu0 0
    %793 = vmatpush1.bf16.msra.mxu0 %v772
    %794 = vmatprep.subr.bf16.mxu0 0
    %795 = vmatpush1.bf16.msra.mxu0 %v773
    %796 = vmatprep.subr.bf16.mxu0 0
    %797 = vmatpush1.bf16.msra.mxu0 %v774
    %798 = vmatprep.subr.bf16.mxu0 0
    %799 = vmatpush1.bf16.msra.mxu0 %v775
    %800 = vmatprep.subr.bf16.mxu0 0
    %801 = vmatpush1.bf16.msra.mxu0 0
    %802 = vmatprep.subr.bf16.mxu0 0
    %803 = vmatpush1.bf16.msra.mxu0 0
    %804 = vmatprep.subr.bf16.mxu0 0
    %805 = vmatpush1.bf16.msra.mxu0 0
    %806 = vmatprep.subr.bf16.mxu0 0
    %807 = vmatpush1.bf16.msra.mxu0 0
    %808 = vmatprep.subr.bf16.mxu0 0
    %809 = vmatpush1.bf16.msra.mxu0 0
    %810 = vmatprep.subr.bf16.mxu0 0
    %811 = vmatpush1.bf16.msra.mxu0 0
    %812 = vmatprep.subr.bf16.mxu0 0
    %813 = vmatpush1.bf16.msra.mxu0 0
    %814 = vmatprep.subr.bf16.mxu0 0
    %815 = vmatpush1.bf16.msra.mxu0 0
    %816 = vmatprep.mubr.bf16.mxu0 0
    %817 = vmatmul.mubr.bf16.gmra.mrb[0].mxu0 %v694
    %v818 = vpop.f32.mrb[0].mxu0
    %v819 = vadd.f32 %v734, %v818
    %v820 = vpop.f32.mrb[0].mxu0
    %v821 = vpop.f32.mrb[0].mxu0
    %v822 = vadd.f32 %v734, %v821
    %v823 = vpop.f32.mrb[0].mxu0
    %824 = vmatprep.mubr.bf16.mxu0 0
    %825 = vmatmul.mubr.bf16.gmra.mrb[0].mxu0 %v695
    %v826 = vpop.f32.mrb[0].mxu0
    %v827 = vadd.f32 %v734, %v826
    %v828 = vpop.f32.mrb[0].mxu0
    %v829 = vpop.f32.mrb[0].mxu0
    %v830 = vadd.f32 %v734, %v829
    %v831 = vpop.f32.mrb[0].mxu0
    %832 = vmatprep.mubr.bf16.mxu0 0
    %833 = vmatmul.mubr.bf16.gmra.mrb[0].mxu0 %v696
    %v834 = vpop.f32.mrb[0].mxu0
    %v835 = vadd.f32 %v734, %v834
    %v836 = vpop.f32.mrb[0].mxu0
    %v837 = vpop.f32.mrb[0].mxu0
    %v838 = vadd.f32 %v734, %v837
    %v839 = vpop.f32.mrb[0].mxu0
    %840 = vmatprep.mubr.bf16.mxu0 0
    %841 = vmatmul.mubr.bf16.gmra.mrb[0].mxu0 %v697
    %v842 = vpop.f32.mrb[0].mxu0
    %v843 = vadd.f32 %v734, %v842
    %v844 = vpop.f32.mrb[0].mxu0
    %v845 = vpop.f32.mrb[0].mxu0
    %v846 = vadd.f32 %v734, %v845
    %v847 = vpop.f32.mrb[0].mxu0
    %848 = vmatprep.mubr.bf16.mxu0 0
    %849 = vmatmul.mubr.bf16.gmra.mrb[0].mxu0 %v698
    %v850 = vpop.f32.mrb[0].mxu0
    %v851 = vadd.f32 %v734, %v850
    %v852 = vpop.f32.mrb[0].mxu0
    %v853 = vpop.f32.mrb[0].mxu0
    %v854 = vadd.f32 %v734, %v853
    %v855 = vpop.f32.mrb[0].mxu0
    %856 = vmatprep.mubr.bf16.mxu0 0
    %857 = vmatmul.mubr.bf16.gmra.mrb[0].mxu0 %v699
    %v858 = vpop.f32.mrb[0].mxu0
    %v859 = vadd.f32 %v734, %v858
    %v860 = vpop.f32.mrb[0].mxu0
    %v861 = vpop.f32.mrb[0].mxu0
    %v862 = vadd.f32 %v734, %v861
    %v863 = vpop.f32.mrb[0].mxu0
    %864 = vmatprep.mubr.bf16.mxu0 0
    %865 = vmatmul.mubr.bf16.gmra.mrb[0].mxu0 %v700
    %v866 = vpop.f32.mrb[0].mxu0
    %v867 = vadd.f32 %v734, %v866
    %v868 = vpop.f32.mrb[0].mxu0
    %v869 = vpop.f32.mrb[0].mxu0
    %v870 = vadd.f32 %v734, %v869
    %v871 = vpop.f32.mrb[0].mxu0
    %872 = vmatprep.mubr.bf16.mxu0 0
    %873 = vmatmul.mubr.bf16.gmra.mrb[0].mxu0 %v701
    %v874 = vpop.f32.mrb[0].mxu0
    %v875 = vadd.f32 %v734, %v874
    %v876 = vpop.f32.mrb[0].mxu0
    %v877 = vpop.f32.mrb[0].mxu0
    %v878 = vadd.f32 %v734, %v877
    %v879 = vpop.f32.mrb[0].mxu0
    %880 = vmatprep.mubr.bf16.mxu0 0
    %881 = vmatmul.mubr.bf16.gmra.mrb[0].mxu0 %v702
    %v882 = vpop.f32.mrb[0].mxu0
    %v883 = vadd.f32 %v734, %v882
    %v884 = vpop.f32.mrb[0].mxu0
    %v885 = vpop.f32.mrb[0].mxu0
    %v886 = vadd.f32 %v734, %v885
    %v887 = vpop.f32.mrb[0].mxu0
    %888 = vmatprep.mubr.bf16.mxu0 0
    %889 = vmatmul.mubr.bf16.gmra.mrb[0].mxu0 %v703
    %v890 = vpop.f32.mrb[0].mxu0
    %v891 = vadd.f32 %v734, %v890
    %v892 = vpop.f32.mrb[0].mxu0
    %v893 = vpop.f32.mrb[0].mxu0
    %v894 = vadd.f32 %v734, %v893
    %v895 = vpop.f32.mrb[0].mxu0
    %896 = vmatprep.mubr.bf16.mxu0 0
    %897 = vmatmul.mubr.bf16.gmra.mrb[0].mxu0 %v704
    %v898 = vpop.f32.mrb[0].mxu0
    %v899 = vadd.f32 %v734, %v898
    %v900 = vpop.f32.mrb[0].mxu0
    %v901 = vpop.f32.mrb[0].mxu0
    %v902 = vadd.f32 %v734, %v901
    %v903 = vpop.f32.mrb[0].mxu0
    %904 = vmatprep.mubr.bf16.mxu0 0
    %905 = vmatmul.mubr.bf16.gmra.mrb[0].mxu0 %v705
    %v906 = vpop.f32.mrb[0].mxu0
    %v907 = vadd.f32 %v734, %v906
    %v908 = vpop.f32.mrb[0].mxu0
    %v909 = vpop.f32.mrb[0].mxu0
    %v910 = vadd.f32 %v734, %v909
    %v911 = vpop.f32.mrb[0].mxu0
    %912 = vmatprep.mubr.bf16.mxu0 0
    %913 = vmatmul.mubr.bf16.gmra.mrb[0].mxu0 %v706
    %v914 = vpop.f32.mrb[0].mxu0
    %v915 = vadd.f32 %v734, %v914
    %v916 = vpop.f32.mrb[0].mxu0
    %v917 = vpop.f32.mrb[0].mxu0
    %v918 = vadd.f32 %v734, %v917
    %v919 = vpop.f32.mrb[0].mxu0
    %920 = vmatprep.mubr.bf16.mxu0 0
    %921 = vmatmul.mubr.bf16.gmra.mrb[0].mxu0 %v707
    %v922 = vpop.f32.mrb[0].mxu0
    %v923 = vadd.f32 %v734, %v922
    %v924 = vpop.f32.mrb[0].mxu0
    %v925 = vpop.f32.mrb[0].mxu0
    %v926 = vadd.f32 %v734, %v925
    %v927 = vpop.f32.mrb[0].mxu0
    %928 = vmatprep.mubr.bf16.mxu0 0
    %929 = vmatmul.mubr.bf16.gmra.mrb[0].mxu0 %v708
    %v930 = vpop.f32.mrb[0].mxu0
    %v931 = vadd.f32 %v734, %v930
    %v932 = vpop.f32.mrb[0].mxu0
    %v933 = vpop.f32.mrb[0].mxu0
    %v934 = vadd.f32 %v734, %v933
    %v935 = vpop.f32.mrb[0].mxu0
    %936 = vmatprep.mubr.bf16.mxu0 0
    %937 = vmatmul.mubr.bf16.gmra.mrb[0].mxu0 %v709
    %v938 = vpop.f32.mrb[0].mxu0
    %v939 = vadd.f32 %v734, %v938
    %v940 = vpop.f32.mrb[0].mxu0
    %v941 = vpop.f32.mrb[0].mxu0
    %v942 = vadd.f32 %v734, %v941
    %v943 = vpop.f32.mrb[0].mxu0
    %944 = vmatprep.mubr.bf16.mxu0 0
    %945 = vmatmul.mubr.bf16.gmra.mrb[0].mxu0 %v710
    %v946 = vpop.f32.mrb[0].mxu0
    %v947 = vadd.f32 %v734, %v946
    %v948 = vpop.f32.mrb[0].mxu0
    %v949 = vpop.f32.mrb[0].mxu0
    %v950 = vadd.f32 %v734, %v949
    %v951 = vpop.f32.mrb[0].mxu0
    %952 = vmatprep.mubr.bf16.mxu0 0
    %953 = vmatmul.mubr.bf16.gmra.mrb[0].mxu0 %v711
    %v954 = vpop.f32.mrb[0].mxu0
    %v955 = vadd.f32 %v734, %v954
    %v956 = vpop.f32.mrb[0].mxu0
    %v957 = vpop.f32.mrb[0].mxu0
    %v958 = vadd.f32 %v734, %v957
    %v959 = vpop.f32.mrb[0].mxu0
    %960 = vmatprep.mubr.bf16.mxu0 0
    %961 = vmatmul.mubr.bf16.gmra.mrb[0].mxu0 %v712
    %v962 = vpop.f32.mrb[0].mxu0
    %v963 = vadd.f32 %v734, %v962
    %v964 = vpop.f32.mrb[0].mxu0
    %v965 = vpop.f32.mrb[0].mxu0
    %v966 = vadd.f32 %v734, %v965
    %v967 = vpop.f32.mrb[0].mxu0
    %968 = vdwg.mxu0
    %969 = vst [vmem:[#allocation2] sm:$0xff] %v819
    %970 = vst [vmem:[#allocation2 + $0x8] sm:$0xff] %v822
    %971 = vst [vmem:[#allocation2 + $0x10] sm:$0xff] %v827
    %972 = vst [vmem:[#allocation2 + $0x18] sm:$0xff] %v830
    %973 = vst [vmem:[#allocation2 + $0x20] sm:$0xff] %v835
    %974 = vst [vmem:[#allocation2 + $0x28] sm:$0xff] %v838
    %975 = vst [vmem:[#allocation2 + $0x30] sm:$0xff] %v843
    %976 = vst [vmem:[#allocation2 + $0x38] sm:$0xff] %v846
    %977 = vst [vmem:[#allocation2 + $0x40] sm:$0xff] %v851
    %978 = vst [vmem:[#allocation2 + $0x48] sm:$0xff] %v854
    %979 = vst [vmem:[#allocation2 + $0x50] sm:$0xff] %v859
    %980 = vst [vmem:[#allocation2 + $0x58] sm:$0xff] %v862
    %981 = vst [vmem:[#allocation2 + $0x60] sm:$0xff] %v867
    %982 = vst [vmem:[#allocation2 + $0x68] sm:$0xff] %v870
    %983 = vst [vmem:[#allocation2 + $0x70] sm:$0xff] %v875
    %984 = vst [vmem:[#allocation2 + $0x78] sm:$0xff] %v878
    %985 = vst [vmem:[#allocation2 + $0x80] sm:$0xff] %v883
    %986 = vst [vmem:[#allocation2 + $0x88] sm:$0xff] %v886
    %987 = vst [vmem:[#allocation2 + $0x90] sm:$0xff] %v891
    %988 = vst [vmem:[#allocation2 + $0x98] sm:$0xff] %v894
    %989 = vst [vmem:[#allocation2 + $0xa0] sm:$0xff] %v899
    %990 = vst [vmem:[#allocation2 + $0xa8] sm:$0xff] %v902
    %991 = vst [vmem:[#allocation2 + $0xb0] sm:$0xff] %v907
    %992 = vst [vmem:[#allocation2 + $0xb8] sm:$0xff] %v910
    %993 = vst [vmem:[#allocation2 + $0xc0] sm:$0xff] %v915
    %994 = vst [vmem:[#allocation2 + $0xc8] sm:$0xff] %v918
    %995 = vst [vmem:[#allocation2 + $0xd0] sm:$0xff] %v923
    %996 = vst [vmem:[#allocation2 + $0xd8] sm:$0xff] %v926
    %997 = vst [vmem:[#allocation2 + $0xe0] sm:$0xff] %v931
    %998 = vst [vmem:[#allocation2 + $0xe8] sm:$0xff] %v934
    %999 = vst [vmem:[#allocation2 + $0xf0] sm:$0xff] %v939
    %1000 = vst [vmem:[#allocation2 + $0xf8] sm:$0xff] %v942
    %1001 = vst [vmem:[#allocation2 + $0x100] sm:$0xff] %v947
    %1002 = vst [vmem:[#allocation2 + $0x108] sm:$0xff] %v950
    %1003 = vst [vmem:[#allocation2 + $0x110] sm:$0xff] %v955
    %1004 = vst [vmem:[#allocation2 + $0x118] sm:$0xff] %v958
    %1005 = vst [vmem:[#allocation2 + $0x120] sm:$0xff] %v963
    %1006 = vst [vmem:[#allocation2 + $0x128] sm:$0xff] %v966
    // Predicated region
    $region30: #{tpu_custom_call.1} parent=1 // pred_check
      _
    $region31: #{tpu_custom_call.1} parent=1 // pred_check_branch
      %1008 = sbr.rel (0) target = $region33
    $region32: #{tpu_custom_call.1} parent=1 // pred_region
      %s1010 = ssub.s32 4864, 4864
      %1011 = vsyncadd [#allocation3], %s1010
      %s1012 = sshll.u32 [#allocation2], 4
      %s1013 = int_to_ptr.vmem [resolvable:$true] %s1012
      %1018 = dma.vmem_to_hbm [thread:$0]  %s1013, 4864, %s7, [#allocation3], 128, 128, 8
    $region33: #{tpu_custom_call.1} parent=1 // pred_fallthru
      _
    // Predicated region
    $region34: #{tpu_custom_call.1} parent=1 // pred_check
      _
    $region35: #{tpu_custom_call.1} parent=1 // pred_check_branch
      %1020 = sbr.rel (0) target = $region37
    $region36: #{tpu_custom_call.1} parent=1 // pred_region
      %1021 = dma.done [#allocation3], 4864
    $region37: #{tpu_custom_call.1} parent=1 // pred_fallthru
      _
    %1022 = vsyncpa [#allocation3], 1

</llo_original>
